<compile_context>
chip_gen: v7x
topology: tpu7x:2x2x1
jax: 0.10.0
libtpu: 0.0.40
codegen_flags: <defaults>
</compile_context>

<pallas_src>
import jax
import jax.numpy as jnp
from jax.experimental import pallas as pl
from jax.experimental.pallas import tpu as pltpu


def _round_up(x, m):
    return ((x + m - 1) // m) * m


def _model_emb_kernel(ids_ref, wf_ref, bc_ref, whw_ref, bhw_ref, out_ref):
    # ids_ref : (tile_n, L) int32 char ids
    # wf_ref  : (K, V_pad, E_pad) fused char_emb @ Wconv[k] weight
    # bc_ref  : (1, E_pad) conv bias
    # whw_ref : (E_pad, 2*E_pad) fused highway [W_proj | W_gate]
    # bhw_ref : (1, 2*E_pad)     fused highway [b_proj | b_gate]
    # out_ref : (tile_n, E_pad)
    tn, L = ids_ref.shape
    K, v_pad, e_pad = wf_ref.shape
    l_out = L - K + 1
    rows = tn * l_out

    ids = ids_ref[...]                                            # (tn, L) int32
    # Lane iota is (1, 1, 128): broadcast inside the compare, never materialized
    # at (rows, K*V).
    iota = jax.lax.broadcasted_iota(jnp.int32, (1, 1, v_pad), 2)

    # --- fused embedding-lookup + Conv1d: K depth-128 MXU passes -----------
    conv = jnp.zeros((rows, e_pad), jnp.float32)
    for k in range(K):                                            # K static -> unrolled
        idx_k = ids[:, k:k + l_out]                               # (tn, l_out)
        oh = (idx_k[:, :, None] == iota).astype(jnp.float32)      # (tn, l_out, v_pad)
        conv = conv + jnp.dot(oh.reshape(rows, v_pad), wf_ref[k],
                              preferred_element_type=jnp.float32)  # (rows, E_pad)

    conv = conv.reshape(tn, l_out, e_pad)

    # --- max-pool over time, then bias + ReLU (equivalent reordering) ------
    pooled = jnp.maximum(jnp.max(conv, axis=1) + bc_ref[...], 0.0)  # (tn, E_pad)

    # --- Highway: one fused (tn,128)x(128,256) matmul -----------------------
    hw = jnp.dot(pooled, whw_ref[...],
                 preferred_element_type=jnp.float32) + bhw_ref[...]  # (tn, 2*E_pad)
    proj = jnp.maximum(hw[:, :e_pad], 0.0)
    gate = jax.nn.sigmoid(hw[:, e_pad:])
    hwy = gate * proj + (1.0 - gate) * pooled

    # --- Dropout: identity in eval mode -------------------------------------
    # TODO(synk): training-mode dropout (p=0.3) via pltpu.prng_seed / prng_random_bits.
    out_ref[...] = hwy.astype(out_ref.dtype)


def model_embeddings_forward(input_ids, params, *, tile_n=256):
    """input_ids: (S, B, L) int32 char indices -> (S, B, E) float32."""
    char_emb = params["char_emb"]          # (V, C), pad row already zeroed
    wconv = params["w_conv"]               # (K, C, E)
    bconv = params["b_conv"]               # (1, E)
    wproj = params["w_proj"]               # (E, E)
    bproj = params["b_proj"]               # (1, E)
    wgate = params["w_gate"]               # (E, E)
    bgate = params["b_gate"]               # (1, E)

    S, B, L = input_ids.shape
    V, C = char_emb.shape
    K, _, E = wconv.shape
    V_pad = _round_up(V, 128)              # per-k one-hot width (lane-dense)
    E_pad = _round_up(E, 128)              # lane-dense outputs / weights
    N = S * B

    # Tile sizing: big tiles amortize per-step overhead; cap so the grid has
    # >= 4 steps when N permits (>= 2 per TensorCore on v7x for pipelining),
    # tiles 8-aligned, no divisibility requirement on N.
    tile_n = max(8, min(tile_n, _round_up(pl.cdiv(N, 4), 8)))
    n_tiles = pl.cdiv(N, tile_n)
    N_pad = n_tiles * tile_n

    # --- fold char_emb into the conv weight (wrapper, f32, tiny) ------------
    w_fused = jnp.einsum("vc,kce->kve", char_emb, wconv)               # (K, V, E)
    w_fused = jnp.pad(w_fused, ((0, 0), (0, V_pad - V), (0, E_pad - E)))

    bconv_p = jnp.pad(bconv, ((0, 0), (0, E_pad - E)))
    wproj_p = jnp.pad(wproj, ((0, E_pad - E), (0, E_pad - E)))
    wgate_p = jnp.pad(wgate, ((0, E_pad - E), (0, E_pad - E)))
    bproj_p = jnp.pad(bproj, ((0, 0), (0, E_pad - E)))
    bgate_p = jnp.pad(bgate, ((0, 0), (0, E_pad - E)))
    w_hwy = jnp.concatenate([wproj_p, wgate_p], axis=1)                # (E_pad, 2*E_pad)
    b_hwy = jnp.concatenate([bproj_p, bgate_p], axis=1)                # (1, 2*E_pad)

    # --- dense 2-D id block: im2col happens inside the kernel ---------------
    ids = input_ids.reshape(N, L).astype(jnp.int32)
    ids = jnp.pad(ids, ((0, N_pad - N), (0, 0)))       # padded words -> id 0 (valid)

    # NOTE: the constant-index weight/bias blocks could use
    # pipeline_mode=pl.Buffered(1) to drop their second buffer (~0.5 MB VMEM);
    # skipped here for portability since it is not a binding constraint.
    out = pl.pallas_call(
        _model_emb_kernel,
        out_shape=jax.ShapeDtypeStruct((N_pad, E_pad), jnp.float32),
        grid=(n_tiles,),
        in_specs=[
            pl.BlockSpec((tile_n, L), lambda i: (i, 0)),           # char ids
            pl.BlockSpec((K, V_pad, E_pad), lambda i: (0, 0, 0)),  # fused emb*conv W
            pl.BlockSpec((1, E_pad), lambda i: (0, 0)),            # conv bias
            pl.BlockSpec((E_pad, 2 * E_pad), lambda i: (0, 0)),    # highway [Wp|Wg]
            pl.BlockSpec((1, 2 * E_pad), lambda i: (0, 0)),        # highway [bp|bg]
        ],
        out_specs=pl.BlockSpec((tile_n, E_pad), lambda i: (i, 0)),
        compiler_params=pltpu.CompilerParams(
            dimension_semantics=("parallel",),
            vmem_limit_bytes=48 * 1024 * 1024),
    )(ids, w_fused, bconv_p, w_hwy, b_hwy)

    return out[:N, :E].reshape(S, B, E)


def _reference_forward(input_ids, params):
    """Pure-JAX reference mirroring the PyTorch module (eval mode)."""
    char_emb, wconv, bconv = params["char_emb"], params["w_conv"], params["b_conv"]
    wproj, bproj = params["w_proj"], params["b_proj"]
    wgate, bgate = params["w_gate"], params["b_gate"]
    S, B, L = input_ids.shape
    K, C, E = wconv.shape
    x = char_emb[input_ids].reshape(S * B, L, C).astype(jnp.float32)
    l_out = L - K + 1
    acc = jnp.zeros((S * B, l_out, E), jnp.float32)
    for k in range(K):
        acc = acc + jnp.einsum("nlc,ce->nle", x[:, k:k + l_out, :], wconv[k])
    acc = acc + bconv[0]
    pooled = jnp.max(jax.nn.relu(acc), axis=1)
    proj = jax.nn.relu(pooled @ wproj + bproj)
    gate = jax.nn.sigmoid(pooled @ wgate + bgate)
    out = gate * proj + (1.0 - gate) * pooled
    return out.reshape(S, B, E)


def init_params(key, vocab_size, char_embed_size, embed_size, kernel_size, pad_idx=0):
    ks = jax.random.split(key, 7)
    scale = 0.1
    char_emb = scale * jax.random.normal(ks[0], (vocab_size, char_embed_size), jnp.float32)
    char_emb = char_emb.at[pad_idx].set(0.0)  # nn.Embedding(padding_idx=pad_idx)
    return {
        "char_emb": char_emb,
        "w_conv": scale * jax.random.normal(ks[1], (kernel_size, char_embed_size, embed_size), jnp.float32),
        "b_conv": scale * jax.random.normal(ks[2], (1, embed_size), jnp.float32),
        "w_proj": scale * jax.random.normal(ks[3], (embed_size, embed_size), jnp.float32),
        "b_proj": scale * jax.random.normal(ks[4], (1, embed_size), jnp.float32),
        "w_gate": scale * jax.random.normal(ks[5], (embed_size, embed_size), jnp.float32),
        "b_gate": scale * jax.random.normal(ks[6], (1, embed_size), jnp.float32),
    }


if __name__ == "__main__":
    key = jax.random.PRNGKey(0)

    # Small shapes consistent with the module's forward:
    sentence_length, batch_size, max_word_length = 8, 2, 12
    vocab_size, char_embed_size, embed_size, kernel_size = 96, 50, 32, 5

    pkey, ikey = jax.random.split(key)
    params = init_params(pkey, vocab_size, char_embed_size, embed_size, kernel_size)

    input_ids = jax.random.randint(
        ikey, (sentence_length, batch_size, max_word_length), 0, vocab_size, jnp.int32)

    out = model_embeddings_forward(input_ids, params)
    out = jax.block_until_ready(out)

    assert out.shape == (sentence_length, batch_size, embed_size)

    ref = _reference_forward(input_ids, params)
    assert jnp.allclose(out, ref, atol=3e-5, rtol=3e-5), "mismatch vs JAX reference"

    print("KERNEL_OK")
</pallas_src>

<mosaic_0001>
module attributes {stable_mosaic.version = 11 : i64} {
  func.func @_model_emb_kernel(%arg0: i32, %arg1: memref<8x12xi32, #tpu.memory_space<vmem>>, %arg2: memref<5x128x128xf32, #tpu.memory_space<vmem>>, %arg3: memref<1x128xf32, #tpu.memory_space<vmem>>, %arg4: memref<128x256xf32, #tpu.memory_space<vmem>>, %arg5: memref<1x256xf32, #tpu.memory_space<vmem>>, %arg6: memref<8x128xf32, #tpu.memory_space<vmem>>) attributes {dimension_semantics = [#tpu.dimension_semantics<parallel>], iteration_bounds = array<i64: 2>, scalar_prefetch = 0 : i64, scratch_operands = 0 : i64, tpu.core_type = #tpu.core_type<tc>, window_params = [{transform_indices = @transform_0, window_bounds = array<i64: 8, 12>}, {pipeline_mode = #tpu.pipeline_mode<synchronous>, transform_indices = @transform_1, window_bounds = array<i64: 5, 128, 128>}, {pipeline_mode = #tpu.pipeline_mode<synchronous>, transform_indices = @transform_2, window_bounds = array<i64: 1, 128>}, {pipeline_mode = #tpu.pipeline_mode<synchronous>, transform_indices = @transform_3, window_bounds = array<i64: 128, 256>}, {pipeline_mode = #tpu.pipeline_mode<synchronous>, transform_indices = @transform_4, window_bounds = array<i64: 1, 256>}, {transform_indices = @transform_5, window_bounds = array<i64: 8, 128>}]} {
    %c0 = arith.constant 0 : index
    %c0_0 = arith.constant 0 : index
    %0 = vector.load %arg1[%c0, %c0_0] : memref<8x12xi32, #tpu.memory_space<vmem>>, vector<8x12xi32>
    %1 = tpu.iota {dimensions = array<i32: 2>} : vector<1x1x128xi32>
    %cst = arith.constant 0.000000e+00 : f32
    %2 = vector.broadcast %cst : f32 to vector<64x128xf32>
    %3 = vector.extract_strided_slice %0 {offsets = [0, 0], sizes = [8, 8], strides = [1, 1]} : vector<8x12xi32> to vector<8x8xi32>
    %4 = vector.shape_cast %3 : vector<8x8xi32> to vector<8x8x1xi32>
    %5 = vector.broadcast %4 : vector<8x8x1xi32> to vector<8x8x128xi32>
    %6 = vector.broadcast %1 : vector<1x1x128xi32> to vector<8x8x128xi32>
    %7 = arith.cmpi eq, %5, %6 : vector<8x8x128xi32>
    %8 = arith.extui %7 : vector<8x8x128xi1> to vector<8x8x128xi32>
    %9 = arith.sitofp %8 : vector<8x8x128xi32> to vector<8x8x128xf32>
    %10 = vector.shape_cast %9 : vector<8x8x128xf32> to vector<64x128xf32>
    %c0_1 = arith.constant 0 : index
    %c0_2 = arith.constant 0 : index
    %c0_3 = arith.constant 0 : index
    %11 = vector.load %arg2[%c0_1, %c0_2, %c0_3] : memref<5x128x128xf32, #tpu.memory_space<vmem>>, vector<1x128x128xf32>
    %12 = vector.shape_cast %11 : vector<1x128x128xf32> to vector<128x128xf32>
    %cst_4 = arith.constant dense<0.000000e+00> : vector<64x128xf32>
    %13 = tpu.matmul %10, %12, %cst_4 {dimension_numbers = #tpu.dot_dimension_numbers<[1], [0], [0], [1], [0, 0, 1, 1], [], []>} : vector<64x128xf32>, vector<128x128xf32>, vector<64x128xf32> -> vector<64x128xf32>
    %14 = arith.addf %2, %13 : vector<64x128xf32>
    %15 = vector.extract_strided_slice %0 {offsets = [0, 1], sizes = [8, 8], strides = [1, 1]} : vector<8x12xi32> to vector<8x8xi32>
    %16 = vector.shape_cast %15 : vector<8x8xi32> to vector<8x8x1xi32>
    %17 = vector.broadcast %16 : vector<8x8x1xi32> to vector<8x8x128xi32>
    %18 = vector.broadcast %1 : vector<1x1x128xi32> to vector<8x8x128xi32>
    %19 = arith.cmpi eq, %17, %18 : vector<8x8x128xi32>
    %20 = arith.extui %19 : vector<8x8x128xi1> to vector<8x8x128xi32>
    %21 = arith.sitofp %20 : vector<8x8x128xi32> to vector<8x8x128xf32>
    %22 = vector.shape_cast %21 : vector<8x8x128xf32> to vector<64x128xf32>
    %c1 = arith.constant 1 : index
    %c0_5 = arith.constant 0 : index
    %c0_6 = arith.constant 0 : index
    %23 = vector.load %arg2[%c1, %c0_5, %c0_6] : memref<5x128x128xf32, #tpu.memory_space<vmem>>, vector<1x128x128xf32>
    %24 = vector.shape_cast %23 : vector<1x128x128xf32> to vector<128x128xf32>
    %cst_7 = arith.constant dense<0.000000e+00> : vector<64x128xf32>
    %25 = tpu.matmul %22, %24, %cst_7 {dimension_numbers = #tpu.dot_dimension_numbers<[1], [0], [0], [1], [0, 0, 1, 1], [], []>} : vector<64x128xf32>, vector<128x128xf32>, vector<64x128xf32> -> vector<64x128xf32>
    %26 = arith.addf %14, %25 : vector<64x128xf32>
    %27 = vector.extract_strided_slice %0 {offsets = [0, 2], sizes = [8, 8], strides = [1, 1]} : vector<8x12xi32> to vector<8x8xi32>
    %28 = vector.shape_cast %27 : vector<8x8xi32> to vector<8x8x1xi32>
    %29 = vector.broadcast %28 : vector<8x8x1xi32> to vector<8x8x128xi32>
    %30 = vector.broadcast %1 : vector<1x1x128xi32> to vector<8x8x128xi32>
    %31 = arith.cmpi eq, %29, %30 : vector<8x8x128xi32>
    %32 = arith.extui %31 : vector<8x8x128xi1> to vector<8x8x128xi32>
    %33 = arith.sitofp %32 : vector<8x8x128xi32> to vector<8x8x128xf32>
    %34 = vector.shape_cast %33 : vector<8x8x128xf32> to vector<64x128xf32>
    %c2 = arith.constant 2 : index
    %c0_8 = arith.constant 0 : index
    %c0_9 = arith.constant 0 : index
    %35 = vector.load %arg2[%c2, %c0_8, %c0_9] : memref<5x128x128xf32, #tpu.memory_space<vmem>>, vector<1x128x128xf32>
    %36 = vector.shape_cast %35 : vector<1x128x128xf32> to vector<128x128xf32>
    %cst_10 = arith.constant dense<0.000000e+00> : vector<64x128xf32>
    %37 = tpu.matmul %34, %36, %cst_10 {dimension_numbers = #tpu.dot_dimension_numbers<[1], [0], [0], [1], [0, 0, 1, 1], [], []>} : vector<64x128xf32>, vector<128x128xf32>, vector<64x128xf32> -> vector<64x128xf32>
    %38 = arith.addf %26, %37 : vector<64x128xf32>
    %39 = vector.extract_strided_slice %0 {offsets = [0, 3], sizes = [8, 8], strides = [1, 1]} : vector<8x12xi32> to vector<8x8xi32>
    %40 = vector.shape_cast %39 : vector<8x8xi32> to vector<8x8x1xi32>
    %41 = vector.broadcast %40 : vector<8x8x1xi32> to vector<8x8x128xi32>
    %42 = vector.broadcast %1 : vector<1x1x128xi32> to vector<8x8x128xi32>
    %43 = arith.cmpi eq, %41, %42 : vector<8x8x128xi32>
    %44 = arith.extui %43 : vector<8x8x128xi1> to vector<8x8x128xi32>
    %45 = arith.sitofp %44 : vector<8x8x128xi32> to vector<8x8x128xf32>
    %46 = vector.shape_cast %45 : vector<8x8x128xf32> to vector<64x128xf32>
    %c3 = arith.constant 3 : index
    %c0_11 = arith.constant 0 : index
    %c0_12 = arith.constant 0 : index
    %47 = vector.load %arg2[%c3, %c0_11, %c0_12] : memref<5x128x128xf32, #tpu.memory_space<vmem>>, vector<1x128x128xf32>
    %48 = vector.shape_cast %47 : vector<1x128x128xf32> to vector<128x128xf32>
    %cst_13 = arith.constant dense<0.000000e+00> : vector<64x128xf32>
    %49 = tpu.matmul %46, %48, %cst_13 {dimension_numbers = #tpu.dot_dimension_numbers<[1], [0], [0], [1], [0, 0, 1, 1], [], []>} : vector<64x128xf32>, vector<128x128xf32>, vector<64x128xf32> -> vector<64x128xf32>
    %50 = arith.addf %38, %49 : vector<64x128xf32>
    %51 = vector.extract_strided_slice %0 {offsets = [0, 4], sizes = [8, 8], strides = [1, 1]} : vector<8x12xi32> to vector<8x8xi32>
    %52 = vector.shape_cast %51 : vector<8x8xi32> to vector<8x8x1xi32>
    %53 = vector.broadcast %52 : vector<8x8x1xi32> to vector<8x8x128xi32>
    %54 = vector.broadcast %1 : vector<1x1x128xi32> to vector<8x8x128xi32>
    %55 = arith.cmpi eq, %53, %54 : vector<8x8x128xi32>
    %56 = arith.extui %55 : vector<8x8x128xi1> to vector<8x8x128xi32>
    %57 = arith.sitofp %56 : vector<8x8x128xi32> to vector<8x8x128xf32>
    %58 = vector.shape_cast %57 : vector<8x8x128xf32> to vector<64x128xf32>
    %c4 = arith.constant 4 : index
    %c0_14 = arith.constant 0 : index
    %c0_15 = arith.constant 0 : index
    %59 = vector.load %arg2[%c4, %c0_14, %c0_15] : memref<5x128x128xf32, #tpu.memory_space<vmem>>, vector<1x128x128xf32>
    %60 = vector.shape_cast %59 : vector<1x128x128xf32> to vector<128x128xf32>
    %cst_16 = arith.constant dense<0.000000e+00> : vector<64x128xf32>
    %61 = tpu.matmul %58, %60, %cst_16 {dimension_numbers = #tpu.dot_dimension_numbers<[1], [0], [0], [1], [0, 0, 1, 1], [], []>} : vector<64x128xf32>, vector<128x128xf32>, vector<64x128xf32> -> vector<64x128xf32>
    %62 = arith.addf %50, %61 : vector<64x128xf32>
    %63 = vector.shape_cast %62 : vector<64x128xf32> to vector<8x8x128xf32>
    %cst_17 = arith.constant dense<0xFF800000> : vector<8x128xf32>
    %64 = vector.multi_reduction <maximumf>, %63, %cst_17 [1] : vector<8x8x128xf32> to vector<8x128xf32>
    %c0_18 = arith.constant 0 : index
    %c0_19 = arith.constant 0 : index
    %65 = vector.load %arg3[%c0_18, %c0_19] : memref<1x128xf32, #tpu.memory_space<vmem>>, vector<1x128xf32>
    %66 = vector.broadcast %65 : vector<1x128xf32> to vector<8x128xf32>
    %67 = arith.addf %64, %66 : vector<8x128xf32>
    %cst_20 = arith.constant 0.000000e+00 : f32
    %68 = vector.broadcast %cst_20 : f32 to vector<8x128xf32>
    %69 = arith.maximumf %67, %68 : vector<8x128xf32>
    %c0_21 = arith.constant 0 : index
    %c0_22 = arith.constant 0 : index
    %70 = vector.load %arg4[%c0_21, %c0_22] : memref<128x256xf32, #tpu.memory_space<vmem>>, vector<128x256xf32>
    %cst_23 = arith.constant dense<0.000000e+00> : vector<8x256xf32>
    %71 = tpu.matmul %69, %70, %cst_23 {dimension_numbers = #tpu.dot_dimension_numbers<[1], [0], [0], [1], [0, 0, 1, 1], [], []>} : vector<8x128xf32>, vector<128x256xf32>, vector<8x256xf32> -> vector<8x256xf32>
    %c0_24 = arith.constant 0 : index
    %c0_25 = arith.constant 0 : index
    %72 = vector.load %arg5[%c0_24, %c0_25] : memref<1x256xf32, #tpu.memory_space<vmem>>, vector<1x256xf32>
    %73 = vector.broadcast %72 : vector<1x256xf32> to vector<8x256xf32>
    %74 = arith.addf %71, %73 : vector<8x256xf32>
    %75 = vector.extract_strided_slice %74 {offsets = [0, 0], sizes = [8, 128], strides = [1, 1]} : vector<8x256xf32> to vector<8x128xf32>
    %cst_26 = arith.constant 0.000000e+00 : f32
    %76 = vector.broadcast %cst_26 : f32 to vector<8x128xf32>
    %77 = arith.maximumf %75, %76 : vector<8x128xf32>
    %78 = vector.extract_strided_slice %74 {offsets = [0, 128], sizes = [8, 128], strides = [1, 1]} : vector<8x256xf32> to vector<8x128xf32>
    %79 = arith.negf %78 : vector<8x128xf32>
    %80 = math.exp %79 : vector<8x128xf32>
    %cst_27 = arith.constant 1.000000e+00 : f32
    %81 = vector.broadcast %cst_27 : f32 to vector<8x128xf32>
    %82 = arith.addf %81, %80 : vector<8x128xf32>
    %83 = arith.divf %81, %82 : vector<8x128xf32>
    %84 = arith.mulf %83, %77 : vector<8x128xf32>
    %cst_28 = arith.constant 1.000000e+00 : f32
    %85 = vector.broadcast %cst_28 : f32 to vector<8x128xf32>
    %86 = arith.subf %85, %83 : vector<8x128xf32>
    %87 = arith.mulf %86, %69 : vector<8x128xf32>
    %88 = arith.addf %84, %87 : vector<8x128xf32>
    %c0_29 = arith.constant 0 : index
    %c0_30 = arith.constant 0 : index
    %89 = vector.load %arg6[%c0_29, %c0_30] : memref<8x128xf32, #tpu.memory_space<vmem>>, vector<8x128xf32>
    tpu.vector_store %arg6[%c0_29, %c0_30], %88 {strides = array<i32>} : memref<8x128xf32, #tpu.memory_space<vmem>>, vector<8x128xf32>,
    return
  }
  func.func @transform_0(%arg0: i32) -> (i32, i32) {
    %c0_i32 = arith.constant 0 : i32
    %c0_i32_0 = arith.constant 0 : i32
    return %arg0, %c0_i32 : i32, i32
  }
  func.func @transform_1(%arg0: i32) -> (i32, i32, i32) {
    %c0_i32 = arith.constant 0 : i32
    %c0_i32_0 = arith.constant 0 : i32
    %c0_i32_1 = arith.constant 0 : i32
    %c0_i32_2 = arith.constant 0 : i32
    return %c0_i32, %c0_i32_0, %c0_i32_1 : i32, i32, i32
  }
  func.func @transform_2(%arg0: i32) -> (i32, i32) {
    %c0_i32 = arith.constant 0 : i32
    %c0_i32_0 = arith.constant 0 : i32
    %c0_i32_1 = arith.constant 0 : i32
    return %c0_i32, %c0_i32_0 : i32, i32
  }
  func.func @transform_3(%arg0: i32) -> (i32, i32) {
    %c0_i32 = arith.constant 0 : i32
    %c0_i32_0 = arith.constant 0 : i32
    %c0_i32_1 = arith.constant 0 : i32
    return %c0_i32, %c0_i32_0 : i32, i32
  }
  func.func @transform_4(%arg0: i32) -> (i32, i32) {
    %c0_i32 = arith.constant 0 : i32
    %c0_i32_0 = arith.constant 0 : i32
    %c0_i32_1 = arith.constant 0 : i32
    return %c0_i32, %c0_i32_0 : i32, i32
  }
  func.func @transform_5(%arg0: i32) -> (i32, i32) {
    %c0_i32 = arith.constant 0 : i32
    %c0_i32_0 = arith.constant 0 : i32
    return %arg0, %c0_i32 : i32, i32
  }
}

</mosaic_0001>

<llo_original>
// kernel: tpu_custom_call.1
$region0: #{tpu_custom_call.1}
  #allocation0 [shape = 'u32[]', space=smem, size = 0x4, offset = 0x4, fixed_abs, tag = 'smem constant byte address 0x4 - core index']
  #allocation1 [shape = 'u32[144,128]{1,0:T(1,128)}', space=vmem, size = 0x12000, scoped, tag = 'internal scratch']
  %s0 = inlined_call_operand.hbm [shape: s32[16,12], index: 0, kind: input, shape index: {}]
  %s1 = inlined_call_operand.hbm [shape: f32[5,128,128], index: 1, kind: input, shape index: {}]
  %s2 = inlined_call_operand.vmem [shape: f32[1,128], index: 2, kind: input, shape index: {}]
  %s3 = inlined_call_operand.hbm [shape: f32[128,256], index: 3, kind: input, shape index: {}]
  %s4 = inlined_call_operand.vmem [shape: f32[1,256], index: 4, kind: input, shape index: {}]
  %s5 = inlined_call_operand.hbm [shape: f32[16,128], index: 5, kind: output, shape index: {}]
  %s6 = sld [smem:[#allocation0]]
  $region65: #{tpu_custom_call.1} parent=0
    _
  %s8 = ssub.s32 1, %s6
  %s9 = scalar_select 0, %s8, %s6
  $region1: #{tpu_custom_call.1} parent=0
    #allocation2 [shape = 'u8[8192]{0}', space=vmem, size = 0x2000, scoped, tag = 'input window, operand 0']
    #allocation3 [shape = 's32[2]{0}', space=sflag, size = 0x8, scoped, tag = 'scoped memory for tpu_custom_call.1']
    #allocation4 [shape = 's32[2]{0}', space=sflag, size = 0x8, scoped, tag = 'scoped memory for tpu_custom_call.1']
    #allocation5 [shape = 'u8[327680]{0}', space=vmem, size = 0x50000, scoped, tag = 'input window, operand 1, single buffered']
    #allocation6 [shape = 's32[1]{0}', space=sflag, size = 0x4, scoped, tag = 'scoped memory for tpu_custom_call.1']
    #allocation7 [shape = 'u8[131072]{0}', space=vmem, size = 0x20000, scoped, tag = 'input window, operand 3, single buffered']
    #allocation8 [shape = 'u8[8192]{0}', space=vmem, size = 0x2000, scoped, tag = 'output window, operand 0']
    %10 = vsyncpa [#allocation3], 0
    %s11 = scalar_lea.sflag [#allocation3], 1
    %12 = vsyncpa %s11, 0
    %13 = vsyncpa [#allocation6], 0
    %14 = vsyncpa [#allocation4], 0
    %s15 = scalar_lea.sflag [#allocation4], 1
    %16 = vsyncpa %s15, 0
    loop: start=0, step=1, limit=4
    $region2: #{tpu_custom_call.1} parent=1 // loop_pre_header
      _
    $region3: #{tpu_custom_call.1} parent=1 // loop_header
      %s18 = sphi 0, %s22
      %p19 = scmp.ge.s32.totalorder %s18, 4
      %s28 = sphi 0, %s30
      %s31 = sphi 0, %s28
      %s32 = sphi 0, %s31
      %s48 = sphi 0, %s32
      %s52 = sphi 0, %s52
      %s54 = sphi 0, %s52
      %s55 = sphi 0, %s54
      %s69 = sphi 0, %s55
      %s73 = sphi 0, %s73
      %s75 = sphi 0, %s73
      %s76 = sphi 0, %s75
      %s90 = sphi 0, %s76
      %s94 = sphi 0, %s94
      %s96 = sphi 0, %s94
      %s97 = sphi 0, %s96
      %s111 = sphi 0, %s97
      %s115 = sphi 0, %s115
      %s117 = sphi 0, %s115
      %s118 = sphi 0, %s117
      %s132 = sphi 0, %s118
      %s138 = sphi 0, %s140
      %s141 = sphi 0, %s138
      %s142 = sphi 0, %s141
      %s158 = sphi 0, %s142
    $region4: #{tpu_custom_call.1} parent=1 // loop_header_branch
      %21 = sbr.rel (%p19) target = $region8
    $region5: #{tpu_custom_call.1} parent=1 // loop_body
      %s23 = ssub.s32 %s18, 1
      %s24 = ssub.s32 %s18, 2
      %s25 = sadd.s32 %s18, 1
      %s26 = ssub.s32 %s18, %s25
      %p27 = scmp.eq.s32.totalorder %s26, 0
      %s29 = sadd.s32 %s28, 1
      %s30 = scalar_select %p27, %s28, %s29
      %p33 = pneg %p27
      %p34 = scmp.eq.s32.totalorder %s18, 1
      %p35 = por %p33, %p34
      %p36 = scmp.ne.s32.totalorder %s28, %s31
      %p37 = scmp.eq.s32.totalorder %s18, 0
      %p38 = por %p36, %p37
      %p39 = scmp.ne.s32.totalorder %s28, %s31
      %p40 = scmp.eq.s32.totalorder %s23, 1
      %p41 = por %p39, %p40
      %p42 = scmp.ne.s32.totalorder %s31, %s32
      %p43 = scmp.eq.s32.totalorder %s23, 0
      %p44 = por %p42, %p43
      %p45 = scmp.ne.s32.totalorder %s31, %s32
      %p46 = scmp.eq.s32.totalorder %s24, 1
      %p47 = por %p45, %p46
      %p49 = scmp.ne.s32.totalorder %s32, %s48
      %p50 = scmp.eq.s32.totalorder %s24, 0
      %p51 = por %p49, %p50
      %s53 = sadd.s32 %s52, 1
      %p56 = scmp.eq.s32.totalorder %s18, 1
      %p57 = scmp.ne.s32.totalorder %s52, %s54
      %p58 = scmp.eq.s32.totalorder %s18, 0
      %p59 = por %p57, %p58
      %p60 = scmp.ne.s32.totalorder %s52, %s54
      %p61 = scmp.eq.s32.totalorder %s23, 1
      %p62 = por %p60, %p61
      %p63 = scmp.ne.s32.totalorder %s54, %s55
      %p64 = scmp.eq.s32.totalorder %s23, 0
      %p65 = por %p63, %p64
      %p66 = scmp.ne.s32.totalorder %s54, %s55
      %p67 = scmp.eq.s32.totalorder %s24, 1
      %p68 = por %p66, %p67
      %p70 = scmp.ne.s32.totalorder %s55, %s69
      %p71 = scmp.eq.s32.totalorder %s24, 0
      %p72 = por %p70, %p71
      %s74 = sadd.s32 %s73, 1
      %p77 = scmp.eq.s32.totalorder %s18, 1
      %p78 = scmp.ne.s32.totalorder %s73, %s75
      %p79 = scmp.eq.s32.totalorder %s18, 0
      %p80 = por %p78, %p79
      %p81 = scmp.ne.s32.totalorder %s73, %s75
      %p82 = scmp.eq.s32.totalorder %s23, 1
      %p83 = por %p81, %p82
      %p84 = scmp.ne.s32.totalorder %s75, %s76
      %p85 = scmp.eq.s32.totalorder %s23, 0
      %p86 = por %p84, %p85
      %p87 = scmp.ne.s32.totalorder %s75, %s76
      %p88 = scmp.eq.s32.totalorder %s24, 1
      %p89 = por %p87, %p88
      %p91 = scmp.ne.s32.totalorder %s76, %s90
      %p92 = scmp.eq.s32.totalorder %s24, 0
      %p93 = por %p91, %p92
      %s95 = sadd.s32 %s94, 1
      %p98 = scmp.eq.s32.totalorder %s18, 1
      %p99 = scmp.ne.s32.totalorder %s94, %s96
      %p100 = scmp.eq.s32.totalorder %s18, 0
      %p101 = por %p99, %p100
      %p102 = scmp.ne.s32.totalorder %s94, %s96
      %p103 = scmp.eq.s32.totalorder %s23, 1
      %p104 = por %p102, %p103
      %p105 = scmp.ne.s32.totalorder %s96, %s97
      %p106 = scmp.eq.s32.totalorder %s23, 0
      %p107 = por %p105, %p106
      %p108 = scmp.ne.s32.totalorder %s96, %s97
      %p109 = scmp.eq.s32.totalorder %s24, 1
      %p110 = por %p108, %p109
      %p112 = scmp.ne.s32.totalorder %s97, %s111
      %p113 = scmp.eq.s32.totalorder %s24, 0
      %p114 = por %p112, %p113
      %s116 = sadd.s32 %s115, 1
      %p119 = scmp.eq.s32.totalorder %s18, 1
      %p120 = scmp.ne.s32.totalorder %s115, %s117
      %p121 = scmp.eq.s32.totalorder %s18, 0
      %p122 = por %p120, %p121
      %p123 = scmp.ne.s32.totalorder %s115, %s117
      %p124 = scmp.eq.s32.totalorder %s23, 1
      %p125 = por %p123, %p124
      %p126 = scmp.ne.s32.totalorder %s117, %s118
      %p127 = scmp.eq.s32.totalorder %s23, 0
      %p128 = por %p126, %p127
      %p129 = scmp.ne.s32.totalorder %s117, %s118
      %p130 = scmp.eq.s32.totalorder %s24, 1
      %p131 = por %p129, %p130
      %p133 = scmp.ne.s32.totalorder %s118, %s132
      %p134 = scmp.eq.s32.totalorder %s24, 0
      %p135 = por %p133, %p134
      %s136 = ssub.s32 %s18, %s25
      %p137 = scmp.eq.s32.totalorder %s136, 0
      %s139 = sadd.s32 %s138, 1
      %s140 = scalar_select %p137, %s138, %s139
      %p143 = pneg %p137
      %p144 = scmp.eq.s32.totalorder %s18, 1
      %p145 = por %p143, %p144
      %p146 = scmp.ne.s32.totalorder %s138, %s141
      %p147 = scmp.eq.s32.totalorder %s18, 0
      %p148 = por %p146, %p147
      %p149 = scmp.ne.s32.totalorder %s138, %s141
      %p150 = scmp.eq.s32.totalorder %s23, 1
      %p151 = por %p149, %p150
      %p152 = scmp.ne.s32.totalorder %s141, %s142
      %p153 = scmp.eq.s32.totalorder %s23, 0
      %p154 = por %p152, %p153
      %p155 = scmp.ne.s32.totalorder %s141, %s142
      %p156 = scmp.eq.s32.totalorder %s24, 1
      %p157 = por %p155, %p156
      %p159 = scmp.ne.s32.totalorder %s142, %s158
      %p160 = scmp.eq.s32.totalorder %s24, 0
      %p161 = por %p159, %p160
      %p162 = scmp.le.s32.totalorder 1, %s18
      %p163 = scmp.lt.s32.totalorder %s18, 3
      %p164 = pnand %p162, %p163
      %p165 = pneg %p164
      // Predicated region
      $region9: #{tpu_custom_call.1} parent=5 // pred_check
        _
      $region10: #{tpu_custom_call.1} parent=5 // pred_check_branch
        %167 = sbr.rel (%p164) target = $region12
      $region11: #{tpu_custom_call.1} parent=5 // pred_region
        %s168 = ssub.s32 %s18, 1
        // Predicated region
        $region13: #{tpu_custom_call.1} parent=11 // pred_check
          %p169 = pneg %p65
        $region14: #{tpu_custom_call.1} parent=11 // pred_check_branch
          %171 = sbr.rel (%p169) target = $region16
        $region15: #{tpu_custom_call.1} parent=11 // pred_region
          %s173 = ssub.s32 10240, 10240
          %174 = vsyncadd [#allocation6], %s173
          %s175 = sshll.u32 [#allocation5], 4
          %s176 = int_to_ptr.vmem [resolvable:$true] %s175
          %181 = dma.hbm_to_vmem [thread:$0]  %s1, 10240, %s176, [#allocation6], 128, 128, 8
        $region16: #{tpu_custom_call.1} parent=11 // pred_fallthru
          _
        // Predicated region
        $region17: #{tpu_custom_call.1} parent=11 // pred_check
          %p182 = pneg %p86
        $region18: #{tpu_custom_call.1} parent=11 // pred_check_branch
          %184 = sbr.rel (%p182) target = $region20
        $region19: #{tpu_custom_call.1} parent=11 // pred_region
          _
        $region20: #{tpu_custom_call.1} parent=11 // pred_fallthru
          _
        // Predicated region
        $region21: #{tpu_custom_call.1} parent=11 // pred_check
          %p185 = pneg %p107
        $region22: #{tpu_custom_call.1} parent=11 // pred_check_branch
          %187 = sbr.rel (%p185) target = $region24
        $region23: #{tpu_custom_call.1} parent=11 // pred_region
          %s189 = ssub.s32 4096, 4096
          %190 = vsyncadd [#allocation6], %s189
          %s191 = sshll.u32 [#allocation7], 4
          %s192 = int_to_ptr.vmem [resolvable:$true] %s191
          %197 = dma.hbm_to_vmem [thread:$0]  %s3, 4096, %s192, [#allocation6], 256, 256, 16
        $region24: #{tpu_custom_call.1} parent=11 // pred_fallthru
          _
        // Predicated region
        $region25: #{tpu_custom_call.1} parent=11 // pred_check
          %p198 = pneg %p128
        $region26: #{tpu_custom_call.1} parent=11 // pred_check_branch
          %200 = sbr.rel (%p198) target = $region28
        $region27: #{tpu_custom_call.1} parent=11 // pred_region
          _
        $region28: #{tpu_custom_call.1} parent=11 // pred_fallthru
          _
      $region12: #{tpu_custom_call.1} parent=5 // pred_fallthru
        _
      %p201 = scmp.lt.s32.totalorder %s18, 2
      // Predicated region
      $region29: #{tpu_custom_call.1} parent=5 // pred_check
        %p202 = pneg %p201
      $region30: #{tpu_custom_call.1} parent=5 // pred_check_branch
        %204 = sbr.rel (%p202) target = $region32
      $region31: #{tpu_custom_call.1} parent=5 // pred_region
        // Predicated region
        $region33: #{tpu_custom_call.1} parent=31 // pred_check
          %p205 = pneg %p38
        $region34: #{tpu_custom_call.1} parent=31 // pred_check_branch
          %207 = sbr.rel (%p205) target = $region36
        $region35: #{tpu_custom_call.1} parent=31 // pred_region
          %s208 = sand.u32 %s28, 1
          %s209 = scalar_lea.sflag [#allocation3], %s208
          %s210 = sand.u32 %s28, 1
          %s211 = smul.addr %s210, 8
          %s212 = scalar_lea.vmem [#allocation2], %s211
          %s214 = ssub.s32 128, 128
          %215 = vsyncadd %s209, %s214
          %s216 = smul.addr %s18, 128
          %s217 = scalar_lea.hbm %s0, %s216
          %s219 = sshll.u32 %s212, 4
          %s220 = int_to_ptr.vmem [resolvable:$true] %s219
          %222 = dma.hbm_to_vmem [thread:$0]  %s217, 128, %s220, %s209
        $region36: #{tpu_custom_call.1} parent=31 // pred_fallthru
          _
      $region32: #{tpu_custom_call.1} parent=5 // pred_fallthru
        _
      %p223 = scmp.le.s32.totalorder 1, %s18
      %p224 = scmp.lt.s32.totalorder %s18, 3
      %p225 = pnand %p223, %p224
      %p226 = pneg %p225
      // Predicated region
      $region37: #{tpu_custom_call.1} parent=5 // pred_check
        _
      $region38: #{tpu_custom_call.1} parent=5 // pred_check_branch
        %228 = sbr.rel (%p225) target = $region40
      $region39: #{tpu_custom_call.1} parent=5 // pred_region
        %s229 = ssub.s32 %s18, 1
        %s230 = sand.u32 %s31, 1
        %s231 = scalar_lea.sflag [#allocation3], %s230
        %s232 = sand.u32 %s31, 1
        %s233 = smul.addr %s232, 8
        %s234 = scalar_lea.vmem [#allocation2], %s233
        // Predicated region
        $region41: #{tpu_custom_call.1} parent=39 // pred_check
          %p235 = pneg %p44
        $region42: #{tpu_custom_call.1} parent=39 // pred_check_branch
          %237 = sbr.rel (%p235) target = $region44
        $region43: #{tpu_custom_call.1} parent=39 // pred_region
          %238 = dma.done %s231, 128
        $region44: #{tpu_custom_call.1} parent=39 // pred_fallthru
          _
        // Predicated region
        $region45: #{tpu_custom_call.1} parent=39 // pred_check
          %p239 = pneg %p65
        $region46: #{tpu_custom_call.1} parent=39 // pred_check_branch
          %241 = sbr.rel (%p239) target = $region48
        $region47: #{tpu_custom_call.1} parent=39 // pred_region
          %242 = dma.done [#allocation6], 10240
        $region48: #{tpu_custom_call.1} parent=39 // pred_fallthru
          _
        // Predicated region
        $region49: #{tpu_custom_call.1} parent=39 // pred_check
          %p243 = pneg %p107
        $region50: #{tpu_custom_call.1} parent=39 // pred_check_branch
          %245 = sbr.rel (%p243) target = $region52
        $region51: #{tpu_custom_call.1} parent=39 // pred_region
          %246 = dma.done [#allocation6], 4096
        $region52: #{tpu_custom_call.1} parent=39 // pred_fallthru
          _
        %s247 = sand.u32 %s31, 1
        %s248 = scalar_lea.sflag [#allocation3], %s247
        %s249 = sand.u32 %s31, 1
        %s250 = smul.addr %s249, 8
        %s251 = scalar_lea.vmem [#allocation2], %s250
        %p252 = pneg %p44
        %p253 = pneg %p41
        %p254 = pneg %p65
        %p255 = pneg %p62
        %p256 = pneg %p86
        %p257 = pneg %p83
        %p258 = pneg %p107
        %p259 = pneg %p104
        %p260 = pneg %p128
        %p261 = pneg %p125
        %p262 = pneg %p154
        %p263 = pneg %p151
        %s264 = sand.u32 %s141, 1
        %s265 = scalar_lea.sflag [#allocation4], %s264
        %s266 = sand.u32 %s141, 1
        %s267 = smul.addr %s266, 8
        %s268 = scalar_lea.vmem [#allocation8], %s267
        %v269 = vld [vmem:[%s234] sm:$0xff]
        %v270 = vlaneseq
        %v271 = vand.u32 %v270, 127
        %v272 = vlaneseq
        %v273 = vshrl.u32 %v272, 7
        %v274 = vsub.s32 0, %v273
        %v275 = vrot.slane %v269, %v274
        %277 = vbcast.lane.b32.xlu0 %v275, 256
        %v278 = vpop.permute.xlu0 %277
        %v279 = vlaneseq
        %v280 = vshrl.u32 %v279, 7
        %v281 = vsub.s32 1, %v280
        %v282 = vrot.slane %v269, %v281
        %284 = vbcast.lane.b32.xlu0 %v282, 256
        %v285 = vpop.permute.xlu0 %284
        %v286 = vlaneseq
        %v287 = vshrl.u32 %v286, 7
        %v288 = vsub.s32 2, %v287
        %v289 = vrot.slane %v269, %v288
        %291 = vbcast.lane.b32.xlu0 %v289, 256
        %v292 = vpop.permute.xlu0 %291
        %v293 = vlaneseq
        %v294 = vshrl.u32 %v293, 7
        %v295 = vsub.s32 3, %v294
        %v296 = vrot.slane %v269, %v295
        %298 = vbcast.lane.b32.xlu0 %v296, 256
        %v299 = vpop.permute.xlu0 %298
        %v300 = vlaneseq
        %v301 = vshrl.u32 %v300, 7
        %v302 = vsub.s32 4, %v301
        %v303 = vrot.slane %v269, %v302
        %305 = vbcast.lane.b32.xlu0 %v303, 256
        %v306 = vpop.permute.xlu0 %305
        %v307 = vlaneseq
        %v308 = vshrl.u32 %v307, 7
        %v309 = vsub.s32 5, %v308
        %v310 = vrot.slane %v269, %v309
        %312 = vbcast.lane.b32.xlu0 %v310, 256
        %v313 = vpop.permute.xlu0 %312
        %v314 = vlaneseq
        %v315 = vshrl.u32 %v314, 7
        %v316 = vsub.s32 6, %v315
        %v317 = vrot.slane %v269, %v316
        %319 = vbcast.lane.b32.xlu0 %v317, 256
        %v320 = vpop.permute.xlu0 %319
        %v321 = vlaneseq
        %v322 = vshrl.u32 %v321, 7
        %v323 = vsub.s32 7, %v322
        %v324 = vrot.slane %v269, %v323
        %326 = vbcast.lane.b32.xlu0 %v324, 256
        %v327 = vpop.permute.xlu0 %326
        %vm328 = vcmp.eq.s32.totalorder %v278, %v271
        %vm329 = vcmp.eq.s32.totalorder %v285, %v271
        %vm330 = vcmp.eq.s32.totalorder %v292, %v271
        %vm331 = vcmp.eq.s32.totalorder %v299, %v271
        %vm332 = vcmp.eq.s32.totalorder %v306, %v271
        %vm333 = vcmp.eq.s32.totalorder %v313, %v271
        %vm334 = vcmp.eq.s32.totalorder %v320, %v271
        %vm335 = vcmp.eq.s32.totalorder %v327, %v271
        %v336 = vsel %vm328, 1, 0
        %v337 = vsel %vm329, 1, 0
        %v338 = vsel %vm330, 1, 0
        %v339 = vsel %vm331, 1, 0
        %v340 = vsel %vm332, 1, 0
        %v341 = vsel %vm333, 1, 0
        %v342 = vsel %vm334, 1, 0
        %v343 = vsel %vm335, 1, 0
        %v344 = vcvt.s32.f32 %v336
        %v345 = vcvt.s32.f32 %v337
        %v346 = vcvt.s32.f32 %v338
        %v347 = vcvt.s32.f32 %v339
        %v348 = vcvt.s32.f32 %v340
        %v349 = vcvt.s32.f32 %v341
        %v350 = vcvt.s32.f32 %v342
        %v351 = vcvt.s32.f32 %v343
        %v352 = vld [vmem:[#allocation5] sm:$0xff]
        %v353 = vld [vmem:[#allocation5 + $0x8] sm:$0xff]
        %v354 = vld [vmem:[#allocation5 + $0x10] sm:$0xff]
        %v355 = vld [vmem:[#allocation5 + $0x18] sm:$0xff]
        %v356 = vld [vmem:[#allocation5 + $0x20] sm:$0xff]
        %v357 = vld [vmem:[#allocation5 + $0x28] sm:$0xff]
        %v358 = vld [vmem:[#allocation5 + $0x30] sm:$0xff]
        %v359 = vld [vmem:[#allocation5 + $0x38] sm:$0xff]
        %v360 = vld [vmem:[#allocation5 + $0x40] sm:$0xff]
        %v361 = vld [vmem:[#allocation5 + $0x48] sm:$0xff]
        %v362 = vld [vmem:[#allocation5 + $0x50] sm:$0xff]
        %v363 = vld [vmem:[#allocation5 + $0x58] sm:$0xff]
        %v364 = vld [vmem:[#allocation5 + $0x60] sm:$0xff]
        %v365 = vld [vmem:[#allocation5 + $0x68] sm:$0xff]
        %v366 = vld [vmem:[#allocation5 + $0x70] sm:$0xff]
        %v367 = vld [vmem:[#allocation5 + $0x78] sm:$0xff]
        %s369 = sor.u32 256, 1
        %370 = vbcast.lane.b32.xlu0 %v275, %s369
        %v371 = vpop.permute.xlu0 %370
        %s373 = sor.u32 256, 1
        %374 = vbcast.lane.b32.xlu0 %v282, %s373
        %v375 = vpop.permute.xlu0 %374
        %s377 = sor.u32 256, 1
        %378 = vbcast.lane.b32.xlu0 %v289, %s377
        %v379 = vpop.permute.xlu0 %378
        %s381 = sor.u32 256, 1
        %382 = vbcast.lane.b32.xlu0 %v296, %s381
        %v383 = vpop.permute.xlu0 %382
        %s385 = sor.u32 256, 1
        %386 = vbcast.lane.b32.xlu0 %v303, %s385
        %v387 = vpop.permute.xlu0 %386
        %s389 = sor.u32 256, 1
        %390 = vbcast.lane.b32.xlu0 %v310, %s389
        %v391 = vpop.permute.xlu0 %390
        %s393 = sor.u32 256, 1
        %394 = vbcast.lane.b32.xlu0 %v317, %s393
        %v395 = vpop.permute.xlu0 %394
        %s397 = sor.u32 256, 1
        %398 = vbcast.lane.b32.xlu0 %v324, %s397
        %v399 = vpop.permute.xlu0 %398
        %vm400 = vcmp.eq.s32.totalorder %v371, %v271
        %vm401 = vcmp.eq.s32.totalorder %v375, %v271
        %vm402 = vcmp.eq.s32.totalorder %v379, %v271
        %vm403 = vcmp.eq.s32.totalorder %v383, %v271
        %vm404 = vcmp.eq.s32.totalorder %v387, %v271
        %vm405 = vcmp.eq.s32.totalorder %v391, %v271
        %vm406 = vcmp.eq.s32.totalorder %v395, %v271
        %vm407 = vcmp.eq.s32.totalorder %v399, %v271
        %v408 = vsel %vm400, 1, 0
        %v409 = vsel %vm401, 1, 0
        %v410 = vsel %vm402, 1, 0
        %v411 = vsel %vm403, 1, 0
        %v412 = vsel %vm404, 1, 0
        %v413 = vsel %vm405, 1, 0
        %v414 = vsel %vm406, 1, 0
        %v415 = vsel %vm407, 1, 0
        %v416 = vcvt.s32.f32 %v408
        %v417 = vcvt.s32.f32 %v409
        %v418 = vcvt.s32.f32 %v410
        %v419 = vcvt.s32.f32 %v411
        %v420 = vcvt.s32.f32 %v412
        %v421 = vcvt.s32.f32 %v413
        %v422 = vcvt.s32.f32 %v414
        %v423 = vcvt.s32.f32 %v415
        %s424 = scalar_lea.vmem [#allocation5], 128
        %v425 = vld [vmem:[%s424] sm:$0xff]
        %v426 = vld [vmem:[%s424 + $0x8] sm:$0xff]
        %v427 = vld [vmem:[%s424 + $0x10] sm:$0xff]
        %v428 = vld [vmem:[%s424 + $0x18] sm:$0xff]
        %v429 = vld [vmem:[%s424 + $0x20] sm:$0xff]
        %v430 = vld [vmem:[%s424 + $0x28] sm:$0xff]
        %v431 = vld [vmem:[%s424 + $0x30] sm:$0xff]
        %v432 = vld [vmem:[%s424 + $0x38] sm:$0xff]
        %v433 = vld [vmem:[%s424 + $0x40] sm:$0xff]
        %v434 = vld [vmem:[%s424 + $0x48] sm:$0xff]
        %v435 = vld [vmem:[%s424 + $0x50] sm:$0xff]
        %v436 = vld [vmem:[%s424 + $0x58] sm:$0xff]
        %v437 = vld [vmem:[%s424 + $0x60] sm:$0xff]
        %v438 = vld [vmem:[%s424 + $0x68] sm:$0xff]
        %v439 = vld [vmem:[%s424 + $0x70] sm:$0xff]
        %v440 = vld [vmem:[%s424 + $0x78] sm:$0xff]
        %441 = vmatprep.subr.mxu0 0.0
        %442 = vmatpush1.msra.mxu0 %v425
        %443 = vmatprep.subr.mxu0 0.0
        %444 = vmatpush1.msra.mxu0 %v426
        %445 = vmatprep.subr.mxu0 0.0
        %446 = vmatpush1.msra.mxu0 %v427
        %447 = vmatprep.subr.mxu0 0.0
        %448 = vmatpush1.msra.mxu0 %v428
        %449 = vmatprep.subr.mxu0 0.0
        %450 = vmatpush1.msra.mxu0 %v429
        %451 = vmatprep.subr.mxu0 0.0
        %452 = vmatpush1.msra.mxu0 %v430
        %453 = vmatprep.subr.mxu0 0.0
        %454 = vmatpush1.msra.mxu0 %v431
        %455 = vmatprep.subr.mxu0 0.0
        %456 = vmatpush1.msra.mxu0 %v432
        %457 = vmatprep.subr.mxu0 0.0
        %458 = vmatpush1.msra.mxu0 %v433
        %459 = vmatprep.subr.mxu0 0.0
        %460 = vmatpush1.msra.mxu0 %v434
        %461 = vmatprep.subr.mxu0 0.0
        %462 = vmatpush1.msra.mxu0 %v435
        %463 = vmatprep.subr.mxu0 0.0
        %464 = vmatpush1.msra.mxu0 %v436
        %465 = vmatprep.subr.mxu0 0.0
        %466 = vmatpush1.msra.mxu0 %v437
        %467 = vmatprep.subr.mxu0 0.0
        %468 = vmatpush1.msra.mxu0 %v438
        %469 = vmatprep.subr.mxu0 0.0
        %470 = vmatpush1.msra.mxu0 %v439
        %471 = vmatprep.subr.mxu0 0.0
        %472 = vmatpush1.msra.mxu0 %v440
        %473 = vmatprep.subr.mxu0 0.0
        %474 = vmatpush1.msra.mxu0 0.0
        %475 = vmatprep.subr.mxu0 0.0
        %476 = vmatpush1.msra.mxu0 0.0
        %477 = vmatprep.subr.mxu0 0.0
        %478 = vmatpush1.msra.mxu0 0.0
        %479 = vmatprep.subr.mxu0 0.0
        %480 = vmatpush1.msra.mxu0 0.0
        %481 = vmatprep.subr.mxu0 0.0
        %482 = vmatpush1.msra.mxu0 0.0
        %483 = vmatprep.subr.mxu0 0.0
        %484 = vmatpush1.msra.mxu0 0.0
        %485 = vmatprep.subr.mxu0 0.0
        %486 = vmatpush1.msra.mxu0 0.0
        %487 = vmatprep.subr.mxu0 0.0
        %488 = vmatpush1.msra.mxu0 0.0
        %489 = vmatprep.subr.mxu0 0.0
        %490 = vmatpush1.msra.mxu0 0.0
        %491 = vmatprep.subr.mxu0 0.0
        %492 = vmatpush1.msra.mxu0 0.0
        %493 = vmatprep.subr.mxu0 0.0
        %494 = vmatpush1.msra.mxu0 0.0
        %495 = vmatprep.subr.mxu0 0.0
        %496 = vmatpush1.msra.mxu0 0.0
        %497 = vmatprep.subr.mxu0 0.0
        %498 = vmatpush1.msra.mxu0 0.0
        %499 = vmatprep.subr.mxu0 0.0
        %500 = vmatpush1.msra.mxu0 0.0
        %501 = vmatprep.subr.mxu0 0.0
        %502 = vmatpush1.msra.mxu0 0.0
        %503 = vmatprep.subr.mxu0 0.0
        %504 = vmatpush1.msra.mxu0 0.0
        %505 = vmatprep.mubr.f32.mxu0 0.0
        %506 = vmatmul.mubr.f32.gmra.mrb[0].mxu0 %v416
        %v507 = vpop.f32.mrb[0].mxu0
        %v508 = vadd.f32 0.0, %v507
        %v509 = vpop.f32.mrb[0].mxu0
        %510 = vmatprep.mubr.f32.mxu0 0.0
        %511 = vmatmul.mubr.f32.gmra.mrb[0].mxu0 %v417
        %v512 = vpop.f32.mrb[0].mxu0
        %v513 = vadd.f32 0.0, %v512
        %v514 = vpop.f32.mrb[0].mxu0
        %515 = vmatprep.mubr.f32.mxu0 0.0
        %516 = vmatmul.mubr.f32.gmra.mrb[0].mxu0 %v418
        %v517 = vpop.f32.mrb[0].mxu0
        %v518 = vadd.f32 0.0, %v517
        %v519 = vpop.f32.mrb[0].mxu0
        %520 = vmatprep.mubr.f32.mxu0 0.0
        %521 = vmatmul.mubr.f32.gmra.mrb[0].mxu0 %v419
        %v522 = vpop.f32.mrb[0].mxu0
        %v523 = vadd.f32 0.0, %v522
        %v524 = vpop.f32.mrb[0].mxu0
        %525 = vmatprep.mubr.f32.mxu0 0.0
        %526 = vmatmul.mubr.f32.gmra.mrb[0].mxu0 %v420
        %v527 = vpop.f32.mrb[0].mxu0
        %v528 = vadd.f32 0.0, %v527
        %v529 = vpop.f32.mrb[0].mxu0
        %530 = vmatprep.mubr.f32.mxu0 0.0
        %531 = vmatmul.mubr.f32.gmra.mrb[0].mxu0 %v421
        %v532 = vpop.f32.mrb[0].mxu0
        %v533 = vadd.f32 0.0, %v532
        %v534 = vpop.f32.mrb[0].mxu0
        %535 = vmatprep.mubr.f32.mxu0 0.0
        %536 = vmatmul.mubr.f32.gmra.mrb[0].mxu0 %v422
        %v537 = vpop.f32.mrb[0].mxu0
        %v538 = vadd.f32 0.0, %v537
        %v539 = vpop.f32.mrb[0].mxu0
        %540 = vmatprep.mubr.f32.mxu0 0.0
        %541 = vmatmul.mubr.f32.gmra.mrb[0].mxu0 %v423
        %v542 = vpop.f32.mrb[0].mxu0
        %v543 = vadd.f32 0.0, %v542
        %v544 = vpop.f32.mrb[0].mxu0
        %545 = vdwg.mxu0
        %546 = vmatprep.subr.mxu0 0.0
        %547 = vmatpush1.msra.mxu0 %v352
        %548 = vmatprep.subr.mxu0 0.0
        %549 = vmatpush1.msra.mxu0 %v353
        %550 = vmatprep.subr.mxu0 0.0
        %551 = vmatpush1.msra.mxu0 %v354
        %552 = vmatprep.subr.mxu0 0.0
        %553 = vmatpush1.msra.mxu0 %v355
        %554 = vmatprep.subr.mxu0 0.0
        %555 = vmatpush1.msra.mxu0 %v356
        %556 = vmatprep.subr.mxu0 0.0
        %557 = vmatpush1.msra.mxu0 %v357
        %558 = vmatprep.subr.mxu0 0.0
        %559 = vmatpush1.msra.mxu0 %v358
        %560 = vmatprep.subr.mxu0 0.0
        %561 = vmatpush1.msra.mxu0 %v359
        %562 = vmatprep.subr.mxu0 0.0
        %563 = vmatpush1.msra.mxu0 %v360
        %564 = vmatprep.subr.mxu0 0.0
        %565 = vmatpush1.msra.mxu0 %v361
        %566 = vmatprep.subr.mxu0 0.0
        %567 = vmatpush1.msra.mxu0 %v362
        %568 = vmatprep.subr.mxu0 0.0
        %569 = vmatpush1.msra.mxu0 %v363
        %570 = vmatprep.subr.mxu0 0.0
        %571 = vmatpush1.msra.mxu0 %v364
        %572 = vmatprep.subr.mxu0 0.0
        %573 = vmatpush1.msra.mxu0 %v365
        %574 = vmatprep.subr.mxu0 0.0
        %575 = vmatpush1.msra.mxu0 %v366
        %576 = vmatprep.subr.mxu0 0.0
        %577 = vmatpush1.msra.mxu0 %v367
        %578 = vmatprep.subr.mxu0 0.0
        %579 = vmatpush1.msra.mxu0 0.0
        %580 = vmatprep.subr.mxu0 0.0
        %581 = vmatpush1.msra.mxu0 0.0
        %582 = vmatprep.subr.mxu0 0.0
        %583 = vmatpush1.msra.mxu0 0.0
        %584 = vmatprep.subr.mxu0 0.0
        %585 = vmatpush1.msra.mxu0 0.0
        %586 = vmatprep.subr.mxu0 0.0
        %587 = vmatpush1.msra.mxu0 0.0
        %588 = vmatprep.subr.mxu0 0.0
        %589 = vmatpush1.msra.mxu0 0.0
        %590 = vmatprep.subr.mxu0 0.0
        %591 = vmatpush1.msra.mxu0 0.0
        %592 = vmatprep.subr.mxu0 0.0
        %593 = vmatpush1.msra.mxu0 0.0
        %594 = vmatprep.subr.mxu0 0.0
        %595 = vmatpush1.msra.mxu0 0.0
        %596 = vmatprep.subr.mxu0 0.0
        %597 = vmatpush1.msra.mxu0 0.0
        %598 = vmatprep.subr.mxu0 0.0
        %599 = vmatpush1.msra.mxu0 0.0
        %600 = vmatprep.subr.mxu0 0.0
        %601 = vmatpush1.msra.mxu0 0.0
        %602 = vmatprep.subr.mxu0 0.0
        %603 = vmatpush1.msra.mxu0 0.0
        %604 = vmatprep.subr.mxu0 0.0
        %605 = vmatpush1.msra.mxu0 0.0
        %606 = vmatprep.subr.mxu0 0.0
        %607 = vmatpush1.msra.mxu0 0.0
        %608 = vmatprep.subr.mxu0 0.0
        %609 = vmatpush1.msra.mxu0 0.0
        %610 = vmatprep.mubr.f32.mxu0 0.0
        %611 = vmatmul.mubr.f32.gmra.mrb[0].mxu0 %v344
        %v612 = vpop.f32.mrb[0].mxu0
        %v613 = vadd.f32 %v508, %v612
        %v614 = vpop.f32.mrb[0].mxu0
        %615 = vmatprep.mubr.f32.mxu0 0.0
        %616 = vmatmul.mubr.f32.gmra.mrb[0].mxu0 %v345
        %v617 = vpop.f32.mrb[0].mxu0
        %v618 = vadd.f32 %v513, %v617
        %v619 = vpop.f32.mrb[0].mxu0
        %620 = vmatprep.mubr.f32.mxu0 0.0
        %621 = vmatmul.mubr.f32.gmra.mrb[0].mxu0 %v346
        %v622 = vpop.f32.mrb[0].mxu0
        %v623 = vadd.f32 %v518, %v622
        %v624 = vpop.f32.mrb[0].mxu0
        %625 = vmatprep.mubr.f32.mxu0 0.0
        %626 = vmatmul.mubr.f32.gmra.mrb[0].mxu0 %v347
        %v627 = vpop.f32.mrb[0].mxu0
        %v628 = vadd.f32 %v523, %v627
        %v629 = vpop.f32.mrb[0].mxu0
        %630 = vmatprep.mubr.f32.mxu0 0.0
        %631 = vmatmul.mubr.f32.gmra.mrb[0].mxu0 %v348
        %v632 = vpop.f32.mrb[0].mxu0
        %v633 = vadd.f32 %v528, %v632
        %v634 = vpop.f32.mrb[0].mxu0
        %635 = vmatprep.mubr.f32.mxu0 0.0
        %636 = vmatmul.mubr.f32.gmra.mrb[0].mxu0 %v349
        %v637 = vpop.f32.mrb[0].mxu0
        %v638 = vadd.f32 %v533, %v637
        %v639 = vpop.f32.mrb[0].mxu0
        %640 = vmatprep.mubr.f32.mxu0 0.0
        %641 = vmatmul.mubr.f32.gmra.mrb[0].mxu0 %v350
        %v642 = vpop.f32.mrb[0].mxu0
        %v643 = vadd.f32 %v538, %v642
        %v644 = vpop.f32.mrb[0].mxu0
        %645 = vmatprep.mubr.f32.mxu0 0.0
        %646 = vmatmul.mubr.f32.gmra.mrb[0].mxu0 %v351
        %v647 = vpop.f32.mrb[0].mxu0
        %v648 = vadd.f32 %v543, %v647
        %v649 = vpop.f32.mrb[0].mxu0
        %650 = vdwg.mxu0
        %s652 = sor.u32 256, 2
        %653 = vbcast.lane.b32.xlu0 %v275, %s652
        %v654 = vpop.permute.xlu0 %653
        %s656 = sor.u32 256, 2
        %657 = vbcast.lane.b32.xlu0 %v282, %s656
        %v658 = vpop.permute.xlu0 %657
        %s660 = sor.u32 256, 2
        %661 = vbcast.lane.b32.xlu0 %v289, %s660
        %v662 = vpop.permute.xlu0 %661
        %s664 = sor.u32 256, 2
        %665 = vbcast.lane.b32.xlu0 %v296, %s664
        %v666 = vpop.permute.xlu0 %665
        %s668 = sor.u32 256, 2
        %669 = vbcast.lane.b32.xlu0 %v303, %s668
        %v670 = vpop.permute.xlu0 %669
        %s672 = sor.u32 256, 2
        %673 = vbcast.lane.b32.xlu0 %v310, %s672
        %v674 = vpop.permute.xlu0 %673
        %s676 = sor.u32 256, 2
        %677 = vbcast.lane.b32.xlu0 %v317, %s676
        %v678 = vpop.permute.xlu0 %677
        %s680 = sor.u32 256, 2
        %681 = vbcast.lane.b32.xlu0 %v324, %s680
        %v682 = vpop.permute.xlu0 %681
        %vm683 = vcmp.eq.s32.totalorder %v654, %v271
        %vm684 = vcmp.eq.s32.totalorder %v658, %v271
        %vm685 = vcmp.eq.s32.totalorder %v662, %v271
        %vm686 = vcmp.eq.s32.totalorder %v666, %v271
        %vm687 = vcmp.eq.s32.totalorder %v670, %v271
        %vm688 = vcmp.eq.s32.totalorder %v674, %v271
        %vm689 = vcmp.eq.s32.totalorder %v678, %v271
        %vm690 = vcmp.eq.s32.totalorder %v682, %v271
        %v691 = vsel %vm683, 1, 0
        %v692 = vsel %vm684, 1, 0
        %v693 = vsel %vm685, 1, 0
        %v694 = vsel %vm686, 1, 0
        %v695 = vsel %vm687, 1, 0
        %v696 = vsel %vm688, 1, 0
        %v697 = vsel %vm689, 1, 0
        %v698 = vsel %vm690, 1, 0
        %v699 = vcvt.s32.f32 %v691
        %v700 = vcvt.s32.f32 %v692
        %v701 = vcvt.s32.f32 %v693
        %v702 = vcvt.s32.f32 %v694
        %v703 = vcvt.s32.f32 %v695
        %v704 = vcvt.s32.f32 %v696
        %v705 = vcvt.s32.f32 %v697
        %v706 = vcvt.s32.f32 %v698
        %s707 = scalar_lea.vmem [#allocation5], 256
        %v708 = vld [vmem:[%s707] sm:$0xff]
        %v709 = vld [vmem:[%s707 + $0x8] sm:$0xff]
        %v710 = vld [vmem:[%s707 + $0x10] sm:$0xff]
        %v711 = vld [vmem:[%s707 + $0x18] sm:$0xff]
        %v712 = vld [vmem:[%s707 + $0x20] sm:$0xff]
        %v713 = vld [vmem:[%s707 + $0x28] sm:$0xff]
        %v714 = vld [vmem:[%s707 + $0x30] sm:$0xff]
        %v715 = vld [vmem:[%s707 + $0x38] sm:$0xff]
        %v716 = vld [vmem:[%s707 + $0x40] sm:$0xff]
        %v717 = vld [vmem:[%s707 + $0x48] sm:$0xff]
        %v718 = vld [vmem:[%s707 + $0x50] sm:$0xff]
        %v719 = vld [vmem:[%s707 + $0x58] sm:$0xff]
        %v720 = vld [vmem:[%s707 + $0x60] sm:$0xff]
        %v721 = vld [vmem:[%s707 + $0x68] sm:$0xff]
        %v722 = vld [vmem:[%s707 + $0x70] sm:$0xff]
        %v723 = vld [vmem:[%s707 + $0x78] sm:$0xff]
        %724 = vmatprep.subr.mxu0 0.0
        %725 = vmatpush1.msra.mxu0 %v708
        %726 = vmatprep.subr.mxu0 0.0
        %727 = vmatpush1.msra.mxu0 %v709
        %728 = vmatprep.subr.mxu0 0.0
        %729 = vmatpush1.msra.mxu0 %v710
        %730 = vmatprep.subr.mxu0 0.0
        %731 = vmatpush1.msra.mxu0 %v711
        %732 = vmatprep.subr.mxu0 0.0
        %733 = vmatpush1.msra.mxu0 %v712
        %734 = vmatprep.subr.mxu0 0.0
        %735 = vmatpush1.msra.mxu0 %v713
        %736 = vmatprep.subr.mxu0 0.0
        %737 = vmatpush1.msra.mxu0 %v714
        %738 = vmatprep.subr.mxu0 0.0
        %739 = vmatpush1.msra.mxu0 %v715
        %740 = vmatprep.subr.mxu0 0.0
        %741 = vmatpush1.msra.mxu0 %v716
        %742 = vmatprep.subr.mxu0 0.0
        %743 = vmatpush1.msra.mxu0 %v717
        %744 = vmatprep.subr.mxu0 0.0
        %745 = vmatpush1.msra.mxu0 %v718
        %746 = vmatprep.subr.mxu0 0.0
        %747 = vmatpush1.msra.mxu0 %v719
        %748 = vmatprep.subr.mxu0 0.0
        %749 = vmatpush1.msra.mxu0 %v720
        %750 = vmatprep.subr.mxu0 0.0
        %751 = vmatpush1.msra.mxu0 %v721
        %752 = vmatprep.subr.mxu0 0.0
        %753 = vmatpush1.msra.mxu0 %v722
        %754 = vmatprep.subr.mxu0 0.0
        %755 = vmatpush1.msra.mxu0 %v723
        %756 = vmatprep.subr.mxu0 0.0
        %757 = vmatpush1.msra.mxu0 0.0
        %758 = vmatprep.subr.mxu0 0.0
        %759 = vmatpush1.msra.mxu0 0.0
        %760 = vmatprep.subr.mxu0 0.0
        %761 = vmatpush1.msra.mxu0 0.0
        %762 = vmatprep.subr.mxu0 0.0
        %763 = vmatpush1.msra.mxu0 0.0
        %764 = vmatprep.subr.mxu0 0.0
        %765 = vmatpush1.msra.mxu0 0.0
        %766 = vmatprep.subr.mxu0 0.0
        %767 = vmatpush1.msra.mxu0 0.0
        %768 = vmatprep.subr.mxu0 0.0
        %769 = vmatpush1.msra.mxu0 0.0
        %770 = vmatprep.subr.mxu0 0.0
        %771 = vmatpush1.msra.mxu0 0.0
        %772 = vmatprep.subr.mxu0 0.0
        %773 = vmatpush1.msra.mxu0 0.0
        %774 = vmatprep.subr.mxu0 0.0
        %775 = vmatpush1.msra.mxu0 0.0
        %776 = vmatprep.subr.mxu0 0.0
        %777 = vmatpush1.msra.mxu0 0.0
        %778 = vmatprep.subr.mxu0 0.0
        %779 = vmatpush1.msra.mxu0 0.0
        %780 = vmatprep.subr.mxu0 0.0
        %781 = vmatpush1.msra.mxu0 0.0
        %782 = vmatprep.subr.mxu0 0.0
        %783 = vmatpush1.msra.mxu0 0.0
        %784 = vmatprep.subr.mxu0 0.0
        %785 = vmatpush1.msra.mxu0 0.0
        %786 = vmatprep.subr.mxu0 0.0
        %787 = vmatpush1.msra.mxu0 0.0
        %788 = vmatprep.mubr.f32.mxu0 0.0
        %789 = vmatmul.mubr.f32.gmra.mrb[0].mxu0 %v699
        %v790 = vpop.f32.mrb[0].mxu0
        %v791 = vadd.f32 0.0, %v790
        %v792 = vpop.f32.mrb[0].mxu0
        %793 = vmatprep.mubr.f32.mxu0 0.0
        %794 = vmatmul.mubr.f32.gmra.mrb[0].mxu0 %v700
        %v795 = vpop.f32.mrb[0].mxu0
        %v796 = vadd.f32 0.0, %v795
        %v797 = vpop.f32.mrb[0].mxu0
        %798 = vmatprep.mubr.f32.mxu0 0.0
        %799 = vmatmul.mubr.f32.gmra.mrb[0].mxu0 %v701
        %v800 = vpop.f32.mrb[0].mxu0
        %v801 = vadd.f32 0.0, %v800
        %v802 = vpop.f32.mrb[0].mxu0
        %803 = vmatprep.mubr.f32.mxu0 0.0
        %804 = vmatmul.mubr.f32.gmra.mrb[0].mxu0 %v702
        %v805 = vpop.f32.mrb[0].mxu0
        %v806 = vadd.f32 0.0, %v805
        %v807 = vpop.f32.mrb[0].mxu0
        %808 = vmatprep.mubr.f32.mxu0 0.0
        %809 = vmatmul.mubr.f32.gmra.mrb[0].mxu0 %v703
        %v810 = vpop.f32.mrb[0].mxu0
        %v811 = vadd.f32 0.0, %v810
        %v812 = vpop.f32.mrb[0].mxu0
        %813 = vmatprep.mubr.f32.mxu0 0.0
        %814 = vmatmul.mubr.f32.gmra.mrb[0].mxu0 %v704
        %v815 = vpop.f32.mrb[0].mxu0
        %v816 = vadd.f32 0.0, %v815
        %v817 = vpop.f32.mrb[0].mxu0
        %818 = vmatprep.mubr.f32.mxu0 0.0
        %819 = vmatmul.mubr.f32.gmra.mrb[0].mxu0 %v705
        %v820 = vpop.f32.mrb[0].mxu0
        %v821 = vadd.f32 0.0, %v820
        %v822 = vpop.f32.mrb[0].mxu0
        %823 = vmatprep.mubr.f32.mxu0 0.0
        %824 = vmatmul.mubr.f32.gmra.mrb[0].mxu0 %v706
        %v825 = vpop.f32.mrb[0].mxu0
        %v826 = vadd.f32 0.0, %v825
        %v827 = vpop.f32.mrb[0].mxu0
        %828 = vdwg.mxu0
        %v829 = vadd.f32 %v613, %v791
        %v830 = vadd.f32 %v618, %v796
        %v831 = vadd.f32 %v623, %v801
        %v832 = vadd.f32 %v628, %v806
        %v833 = vadd.f32 %v633, %v811
        %v834 = vadd.f32 %v638, %v816
        %v835 = vadd.f32 %v643, %v821
        %v836 = vadd.f32 %v648, %v826
        %s838 = sor.u32 256, 3
        %839 = vbcast.lane.b32.xlu0 %v275, %s838
        %v840 = vpop.permute.xlu0 %839
        %s842 = sor.u32 256, 3
        %843 = vbcast.lane.b32.xlu0 %v282, %s842
        %v844 = vpop.permute.xlu0 %843
        %s846 = sor.u32 256, 3
        %847 = vbcast.lane.b32.xlu0 %v289, %s846
        %v848 = vpop.permute.xlu0 %847
        %s850 = sor.u32 256, 3
        %851 = vbcast.lane.b32.xlu0 %v296, %s850
        %v852 = vpop.permute.xlu0 %851
        %s854 = sor.u32 256, 3
        %855 = vbcast.lane.b32.xlu0 %v303, %s854
        %v856 = vpop.permute.xlu0 %855
        %s858 = sor.u32 256, 3
        %859 = vbcast.lane.b32.xlu0 %v310, %s858
        %v860 = vpop.permute.xlu0 %859
        %s862 = sor.u32 256, 3
        %863 = vbcast.lane.b32.xlu0 %v317, %s862
        %v864 = vpop.permute.xlu0 %863
        %s866 = sor.u32 256, 3
        %867 = vbcast.lane.b32.xlu0 %v324, %s866
        %v868 = vpop.permute.xlu0 %867
        %vm869 = vcmp.eq.s32.totalorder %v840, %v271
        %vm870 = vcmp.eq.s32.totalorder %v844, %v271
        %vm871 = vcmp.eq.s32.totalorder %v848, %v271
        %vm872 = vcmp.eq.s32.totalorder %v852, %v271
        %vm873 = vcmp.eq.s32.totalorder %v856, %v271
        %vm874 = vcmp.eq.s32.totalorder %v860, %v271
        %vm875 = vcmp.eq.s32.totalorder %v864, %v271
        %vm876 = vcmp.eq.s32.totalorder %v868, %v271
        %v877 = vsel %vm869, 1, 0
        %v878 = vsel %vm870, 1, 0
        %v879 = vsel %vm871, 1, 0
        %v880 = vsel %vm872, 1, 0
        %v881 = vsel %vm873, 1, 0
        %v882 = vsel %vm874, 1, 0
        %v883 = vsel %vm875, 1, 0
        %v884 = vsel %vm876, 1, 0
        %v885 = vcvt.s32.f32 %v877
        %v886 = vcvt.s32.f32 %v878
        %v887 = vcvt.s32.f32 %v879
        %v888 = vcvt.s32.f32 %v880
        %v889 = vcvt.s32.f32 %v881
        %v890 = vcvt.s32.f32 %v882
        %v891 = vcvt.s32.f32 %v883
        %v892 = vcvt.s32.f32 %v884
        %s893 = scalar_lea.vmem [#allocation5], 384
        %v894 = vld [vmem:[%s893] sm:$0xff]
        %v895 = vld [vmem:[%s893 + $0x8] sm:$0xff]
        %v896 = vld [vmem:[%s893 + $0x10] sm:$0xff]
        %v897 = vld [vmem:[%s893 + $0x18] sm:$0xff]
        %v898 = vld [vmem:[%s893 + $0x20] sm:$0xff]
        %v899 = vld [vmem:[%s893 + $0x28] sm:$0xff]
        %v900 = vld [vmem:[%s893 + $0x30] sm:$0xff]
        %v901 = vld [vmem:[%s893 + $0x38] sm:$0xff]
        %v902 = vld [vmem:[%s893 + $0x40] sm:$0xff]
        %v903 = vld [vmem:[%s893 + $0x48] sm:$0xff]
        %v904 = vld [vmem:[%s893 + $0x50] sm:$0xff]
        %v905 = vld [vmem:[%s893 + $0x58] sm:$0xff]
        %v906 = vld [vmem:[%s893 + $0x60] sm:$0xff]
        %v907 = vld [vmem:[%s893 + $0x68] sm:$0xff]
        %v908 = vld [vmem:[%s893 + $0x70] sm:$0xff]
        %v909 = vld [vmem:[%s893 + $0x78] sm:$0xff]
        %910 = vmatprep.subr.mxu0 0.0
        %911 = vmatpush1.msra.mxu0 %v894
        %912 = vmatprep.subr.mxu0 0.0
        %913 = vmatpush1.msra.mxu0 %v895
        %914 = vmatprep.subr.mxu0 0.0
        %915 = vmatpush1.msra.mxu0 %v896
        %916 = vmatprep.subr.mxu0 0.0
        %917 = vmatpush1.msra.mxu0 %v897
        %918 = vmatprep.subr.mxu0 0.0
        %919 = vmatpush1.msra.mxu0 %v898
        %920 = vmatprep.subr.mxu0 0.0
        %921 = vmatpush1.msra.mxu0 %v899
        %922 = vmatprep.subr.mxu0 0.0
        %923 = vmatpush1.msra.mxu0 %v900
        %924 = vmatprep.subr.mxu0 0.0
        %925 = vmatpush1.msra.mxu0 %v901
        %926 = vmatprep.subr.mxu0 0.0
        %927 = vmatpush1.msra.mxu0 %v902
        %928 = vmatprep.subr.mxu0 0.0
        %929 = vmatpush1.msra.mxu0 %v903
        %930 = vmatprep.subr.mxu0 0.0
        %931 = vmatpush1.msra.mxu0 %v904
        %932 = vmatprep.subr.mxu0 0.0
        %933 = vmatpush1.msra.mxu0 %v905
        %934 = vmatprep.subr.mxu0 0.0
        %935 = vmatpush1.msra.mxu0 %v906
        %936 = vmatprep.subr.mxu0 0.0
        %937 = vmatpush1.msra.mxu0 %v907
        %938 = vmatprep.subr.mxu0 0.0
        %939 = vmatpush1.msra.mxu0 %v908
        %940 = vmatprep.subr.mxu0 0.0
        %941 = vmatpush1.msra.mxu0 %v909
        %942 = vmatprep.subr.mxu0 0.0
        %943 = vmatpush1.msra.mxu0 0.0
        %944 = vmatprep.subr.mxu0 0.0
        %945 = vmatpush1.msra.mxu0 0.0
        %946 = vmatprep.subr.mxu0 0.0
        %947 = vmatpush1.msra.mxu0 0.0
        %948 = vmatprep.subr.mxu0 0.0
        %949 = vmatpush1.msra.mxu0 0.0
        %950 = vmatprep.subr.mxu0 0.0
        %951 = vmatpush1.msra.mxu0 0.0
        %952 = vmatprep.subr.mxu0 0.0
        %953 = vmatpush1.msra.mxu0 0.0
        %954 = vmatprep.subr.mxu0 0.0
        %955 = vmatpush1.msra.mxu0 0.0
        %956 = vmatprep.subr.mxu0 0.0
        %957 = vmatpush1.msra.mxu0 0.0
        %958 = vmatprep.subr.mxu0 0.0
        %959 = vmatpush1.msra.mxu0 0.0
        %960 = vmatprep.subr.mxu0 0.0
        %961 = vmatpush1.msra.mxu0 0.0
        %962 = vmatprep.subr.mxu0 0.0
        %963 = vmatpush1.msra.mxu0 0.0
        %964 = vmatprep.subr.mxu0 0.0
        %965 = vmatpush1.msra.mxu0 0.0
        %966 = vmatprep.subr.mxu0 0.0
        %967 = vmatpush1.msra.mxu0 0.0
        %968 = vmatprep.subr.mxu0 0.0
        %969 = vmatpush1.msra.mxu0 0.0
        %970 = vmatprep.subr.mxu0 0.0
        %971 = vmatpush1.msra.mxu0 0.0
        %972 = vmatprep.subr.mxu0 0.0
        %973 = vmatpush1.msra.mxu0 0.0
        %974 = vmatprep.mubr.f32.mxu0 0.0
        %975 = vmatmul.mubr.f32.gmra.mrb[0].mxu0 %v885
        %v976 = vpop.f32.mrb[0].mxu0
        %v977 = vadd.f32 0.0, %v976
        %v978 = vpop.f32.mrb[0].mxu0
        %979 = vmatprep.mubr.f32.mxu0 0.0
        %980 = vmatmul.mubr.f32.gmra.mrb[0].mxu0 %v886
        %v981 = vpop.f32.mrb[0].mxu0
        %v982 = vadd.f32 0.0, %v981
        %v983 = vpop.f32.mrb[0].mxu0
        %984 = vmatprep.mubr.f32.mxu0 0.0
        %985 = vmatmul.mubr.f32.gmra.mrb[0].mxu0 %v887
        %v986 = vpop.f32.mrb[0].mxu0
        %v987 = vadd.f32 0.0, %v986
        %v988 = vpop.f32.mrb[0].mxu0
        %989 = vmatprep.mubr.f32.mxu0 0.0
        %990 = vmatmul.mubr.f32.gmra.mrb[0].mxu0 %v888
        %v991 = vpop.f32.mrb[0].mxu0
        %v992 = vadd.f32 0.0, %v991
        %v993 = vpop.f32.mrb[0].mxu0
        %994 = vmatprep.mubr.f32.mxu0 0.0
        %995 = vmatmul.mubr.f32.gmra.mrb[0].mxu0 %v889
        %v996 = vpop.f32.mrb[0].mxu0
        %v997 = vadd.f32 0.0, %v996
        %v998 = vpop.f32.mrb[0].mxu0
        %999 = vmatprep.mubr.f32.mxu0 0.0
        %1000 = vmatmul.mubr.f32.gmra.mrb[0].mxu0 %v890
        %v1001 = vpop.f32.mrb[0].mxu0
        %v1002 = vadd.f32 0.0, %v1001
        %v1003 = vpop.f32.mrb[0].mxu0
        %1004 = vmatprep.mubr.f32.mxu0 0.0
        %1005 = vmatmul.mubr.f32.gmra.mrb[0].mxu0 %v891
        %v1006 = vpop.f32.mrb[0].mxu0
        %v1007 = vadd.f32 0.0, %v1006
        %v1008 = vpop.f32.mrb[0].mxu0
        %1009 = vmatprep.mubr.f32.mxu0 0.0
        %1010 = vmatmul.mubr.f32.gmra.mrb[0].mxu0 %v892
        %v1011 = vpop.f32.mrb[0].mxu0
        %v1012 = vadd.f32 0.0, %v1011
        %v1013 = vpop.f32.mrb[0].mxu0
        %1014 = vdwg.mxu0
        %v1015 = vadd.f32 %v829, %v977
        %v1016 = vadd.f32 %v830, %v982
        %v1017 = vadd.f32 %v831, %v987
        %v1018 = vadd.f32 %v832, %v992
        %v1019 = vadd.f32 %v833, %v997
        %v1020 = vadd.f32 %v834, %v1002
        %v1021 = vadd.f32 %v835, %v1007
        %v1022 = vadd.f32 %v836, %v1012
        %s1024 = sor.u32 256, 4
        %1025 = vbcast.lane.b32.xlu0 %v275, %s1024
        %v1026 = vpop.permute.xlu0 %1025
        %s1028 = sor.u32 256, 4
        %1029 = vbcast.lane.b32.xlu0 %v282, %s1028
        %v1030 = vpop.permute.xlu0 %1029
        %s1032 = sor.u32 256, 4
        %1033 = vbcast.lane.b32.xlu0 %v289, %s1032
        %v1034 = vpop.permute.xlu0 %1033
        %s1036 = sor.u32 256, 4
        %1037 = vbcast.lane.b32.xlu0 %v296, %s1036
        %v1038 = vpop.permute.xlu0 %1037
        %s1040 = sor.u32 256, 4
        %1041 = vbcast.lane.b32.xlu0 %v303, %s1040
        %v1042 = vpop.permute.xlu0 %1041
        %s1044 = sor.u32 256, 4
        %1045 = vbcast.lane.b32.xlu0 %v310, %s1044
        %v1046 = vpop.permute.xlu0 %1045
        %s1048 = sor.u32 256, 4
        %1049 = vbcast.lane.b32.xlu0 %v317, %s1048
        %v1050 = vpop.permute.xlu0 %1049
        %s1052 = sor.u32 256, 4
        %1053 = vbcast.lane.b32.xlu0 %v324, %s1052
        %v1054 = vpop.permute.xlu0 %1053
        %vm1055 = vcmp.eq.s32.totalorder %v1026, %v271
        %vm1056 = vcmp.eq.s32.totalorder %v1030, %v271
        %vm1057 = vcmp.eq.s32.totalorder %v1034, %v271
        %vm1058 = vcmp.eq.s32.totalorder %v1038, %v271
        %vm1059 = vcmp.eq.s32.totalorder %v1042, %v271
        %vm1060 = vcmp.eq.s32.totalorder %v1046, %v271
        %vm1061 = vcmp.eq.s32.totalorder %v1050, %v271
        %vm1062 = vcmp.eq.s32.totalorder %v1054, %v271
        %v1063 = vsel %vm1055, 1, 0
        %v1064 = vsel %vm1056, 1, 0
        %v1065 = vsel %vm1057, 1, 0
        %v1066 = vsel %vm1058, 1, 0
        %v1067 = vsel %vm1059, 1, 0
        %v1068 = vsel %vm1060, 1, 0
        %v1069 = vsel %vm1061, 1, 0
        %v1070 = vsel %vm1062, 1, 0
        %v1071 = vcvt.s32.f32 %v1063
        %v1072 = vcvt.s32.f32 %v1064
        %v1073 = vcvt.s32.f32 %v1065
        %v1074 = vcvt.s32.f32 %v1066
        %v1075 = vcvt.s32.f32 %v1067
        %v1076 = vcvt.s32.f32 %v1068
        %v1077 = vcvt.s32.f32 %v1069
        %v1078 = vcvt.s32.f32 %v1070
        %s1079 = scalar_lea.vmem [#allocation5], 512
        %v1080 = vld [vmem:[%s1079] sm:$0xff]
        %v1081 = vld [vmem:[%s1079 + $0x8] sm:$0xff]
        %v1082 = vld [vmem:[%s1079 + $0x10] sm:$0xff]
        %v1083 = vld [vmem:[%s1079 + $0x18] sm:$0xff]
        %v1084 = vld [vmem:[%s1079 + $0x20] sm:$0xff]
        %v1085 = vld [vmem:[%s1079 + $0x28] sm:$0xff]
        %v1086 = vld [vmem:[%s1079 + $0x30] sm:$0xff]
        %v1087 = vld [vmem:[%s1079 + $0x38] sm:$0xff]
        %v1088 = vld [vmem:[%s1079 + $0x40] sm:$0xff]
        %v1089 = vld [vmem:[%s1079 + $0x48] sm:$0xff]
        %v1090 = vld [vmem:[%s1079 + $0x50] sm:$0xff]
        %v1091 = vld [vmem:[%s1079 + $0x58] sm:$0xff]
        %v1092 = vld [vmem:[%s1079 + $0x60] sm:$0xff]
        %v1093 = vld [vmem:[%s1079 + $0x68] sm:$0xff]
        %v1094 = vld [vmem:[%s1079 + $0x70] sm:$0xff]
        %v1095 = vld [vmem:[%s1079 + $0x78] sm:$0xff]
        %1096 = vmatprep.subr.mxu0 0.0
        %1097 = vmatpush1.msra.mxu0 %v1080
        %1098 = vmatprep.subr.mxu0 0.0
        %1099 = vmatpush1.msra.mxu0 %v1081
        %1100 = vmatprep.subr.mxu0 0.0
        %1101 = vmatpush1.msra.mxu0 %v1082
        %1102 = vmatprep.subr.mxu0 0.0
        %1103 = vmatpush1.msra.mxu0 %v1083
        %1104 = vmatprep.subr.mxu0 0.0
        %1105 = vmatpush1.msra.mxu0 %v1084
        %1106 = vmatprep.subr.mxu0 0.0
        %1107 = vmatpush1.msra.mxu0 %v1085
        %1108 = vmatprep.subr.mxu0 0.0
        %1109 = vmatpush1.msra.mxu0 %v1086
        %1110 = vmatprep.subr.mxu0 0.0
        %1111 = vmatpush1.msra.mxu0 %v1087
        %1112 = vmatprep.subr.mxu0 0.0
        %1113 = vmatpush1.msra.mxu0 %v1088
        %1114 = vmatprep.subr.mxu0 0.0
        %1115 = vmatpush1.msra.mxu0 %v1089
        %1116 = vmatprep.subr.mxu0 0.0
        %1117 = vmatpush1.msra.mxu0 %v1090
        %1118 = vmatprep.subr.mxu0 0.0
        %1119 = vmatpush1.msra.mxu0 %v1091
        %1120 = vmatprep.subr.mxu0 0.0
        %1121 = vmatpush1.msra.mxu0 %v1092
        %1122 = vmatprep.subr.mxu0 0.0
        %1123 = vmatpush1.msra.mxu0 %v1093
        %1124 = vmatprep.subr.mxu0 0.0
        %1125 = vmatpush1.msra.mxu0 %v1094
        %1126 = vmatprep.subr.mxu0 0.0
        %1127 = vmatpush1.msra.mxu0 %v1095
        %1128 = vmatprep.subr.mxu0 0.0
        %1129 = vmatpush1.msra.mxu0 0.0
        %1130 = vmatprep.subr.mxu0 0.0
        %1131 = vmatpush1.msra.mxu0 0.0
        %1132 = vmatprep.subr.mxu0 0.0
        %1133 = vmatpush1.msra.mxu0 0.0
        %1134 = vmatprep.subr.mxu0 0.0
        %1135 = vmatpush1.msra.mxu0 0.0
        %1136 = vmatprep.subr.mxu0 0.0
        %1137 = vmatpush1.msra.mxu0 0.0
        %1138 = vmatprep.subr.mxu0 0.0
        %1139 = vmatpush1.msra.mxu0 0.0
        %1140 = vmatprep.subr.mxu0 0.0
        %1141 = vmatpush1.msra.mxu0 0.0
        %1142 = vmatprep.subr.mxu0 0.0
        %1143 = vmatpush1.msra.mxu0 0.0
        %1144 = vmatprep.subr.mxu0 0.0
        %1145 = vmatpush1.msra.mxu0 0.0
        %1146 = vmatprep.subr.mxu0 0.0
        %1147 = vmatpush1.msra.mxu0 0.0
        %1148 = vmatprep.subr.mxu0 0.0
        %1149 = vmatpush1.msra.mxu0 0.0
        %1150 = vmatprep.subr.mxu0 0.0
        %1151 = vmatpush1.msra.mxu0 0.0
        %1152 = vmatprep.subr.mxu0 0.0
        %1153 = vmatpush1.msra.mxu0 0.0
        %1154 = vmatprep.subr.mxu0 0.0
        %1155 = vmatpush1.msra.mxu0 0.0
        %1156 = vmatprep.subr.mxu0 0.0
        %1157 = vmatpush1.msra.mxu0 0.0
        %1158 = vmatprep.subr.mxu0 0.0
        %1159 = vmatpush1.msra.mxu0 0.0
        %1160 = vmatprep.mubr.f32.mxu0 0.0
        %1161 = vmatmul.mubr.f32.gmra.mrb[0].mxu0 %v1071
        %v1162 = vpop.f32.mrb[0].mxu0
        %v1163 = vadd.f32 0.0, %v1162
        %v1164 = vpop.f32.mrb[0].mxu0
        %1165 = vmatprep.mubr.f32.mxu0 0.0
        %1166 = vmatmul.mubr.f32.gmra.mrb[0].mxu0 %v1072
        %v1167 = vpop.f32.mrb[0].mxu0
        %v1168 = vadd.f32 0.0, %v1167
        %v1169 = vpop.f32.mrb[0].mxu0
        %1170 = vmatprep.mubr.f32.mxu0 0.0
        %1171 = vmatmul.mubr.f32.gmra.mrb[0].mxu0 %v1073
        %v1172 = vpop.f32.mrb[0].mxu0
        %v1173 = vadd.f32 0.0, %v1172
        %v1174 = vpop.f32.mrb[0].mxu0
        %1175 = vmatprep.mubr.f32.mxu0 0.0
        %1176 = vmatmul.mubr.f32.gmra.mrb[0].mxu0 %v1074
        %v1177 = vpop.f32.mrb[0].mxu0
        %v1178 = vadd.f32 0.0, %v1177
        %v1179 = vpop.f32.mrb[0].mxu0
        %1180 = vmatprep.mubr.f32.mxu0 0.0
        %1181 = vmatmul.mubr.f32.gmra.mrb[0].mxu0 %v1075
        %v1182 = vpop.f32.mrb[0].mxu0
        %v1183 = vadd.f32 0.0, %v1182
        %v1184 = vpop.f32.mrb[0].mxu0
        %1185 = vmatprep.mubr.f32.mxu0 0.0
        %1186 = vmatmul.mubr.f32.gmra.mrb[0].mxu0 %v1076
        %v1187 = vpop.f32.mrb[0].mxu0
        %v1188 = vadd.f32 0.0, %v1187
        %v1189 = vpop.f32.mrb[0].mxu0
        %1190 = vmatprep.mubr.f32.mxu0 0.0
        %1191 = vmatmul.mubr.f32.gmra.mrb[0].mxu0 %v1077
        %v1192 = vpop.f32.mrb[0].mxu0
        %v1193 = vadd.f32 0.0, %v1192
        %v1194 = vpop.f32.mrb[0].mxu0
        %1195 = vmatprep.mubr.f32.mxu0 0.0
        %1196 = vmatmul.mubr.f32.gmra.mrb[0].mxu0 %v1078
        %v1197 = vpop.f32.mrb[0].mxu0
        %v1198 = vadd.f32 0.0, %v1197
        %v1199 = vpop.f32.mrb[0].mxu0
        %1200 = vdwg.mxu0
        %v1201 = vadd.f32 %v1015, %v1163
        %v1202 = vadd.f32 %v1016, %v1168
        %v1203 = vadd.f32 %v1017, %v1173
        %v1204 = vadd.f32 %v1018, %v1178
        %v1205 = vadd.f32 %v1019, %v1183
        %v1206 = vadd.f32 %v1020, %v1188
        %v1207 = vadd.f32 %v1021, %v1193
        %v1208 = vadd.f32 %v1022, %v1198
        %v1209 = vrot.slane %v1201, 4
        %v1210 = vmax.f32 %v1201, %v1209
        %v1211 = vrot.slane %v1210, 2
        %v1212 = vmax.f32 %v1210, %v1211
        %v1213 = vrot.slane %v1212, 1
        %v1214 = vmax.f32 %v1212, %v1213
        %v1215 = vrot.slane %v1202, 4
        %v1216 = vmax.f32 %v1202, %v1215
        %v1217 = vrot.slane %v1216, 2
        %v1218 = vmax.f32 %v1216, %v1217
        %v1219 = vrot.slane %v1218, 1
        %v1220 = vmax.f32 %v1218, %v1219
        %v1221 = vrot.slane %v1203, 4
        %v1222 = vmax.f32 %v1203, %v1221
        %v1223 = vrot.slane %v1222, 2
        %v1224 = vmax.f32 %v1222, %v1223
        %v1225 = vrot.slane %v1224, 1
        %v1226 = vmax.f32 %v1224, %v1225
        %v1227 = vrot.slane %v1204, 4
        %v1228 = vmax.f32 %v1204, %v1227
        %v1229 = vrot.slane %v1228, 2
        %v1230 = vmax.f32 %v1228, %v1229
        %v1231 = vrot.slane %v1230, 1
        %v1232 = vmax.f32 %v1230, %v1231
        %v1233 = vrot.slane %v1205, 4
        %v1234 = vmax.f32 %v1205, %v1233
        %v1235 = vrot.slane %v1234, 2
        %v1236 = vmax.f32 %v1234, %v1235
        %v1237 = vrot.slane %v1236, 1
        %v1238 = vmax.f32 %v1236, %v1237
        %v1239 = vrot.slane %v1206, 4
        %v1240 = vmax.f32 %v1206, %v1239
        %v1241 = vrot.slane %v1240, 2
        %v1242 = vmax.f32 %v1240, %v1241
        %v1243 = vrot.slane %v1242, 1
        %v1244 = vmax.f32 %v1242, %v1243
        %v1245 = vrot.slane %v1207, 4
        %v1246 = vmax.f32 %v1207, %v1245
        %v1247 = vrot.slane %v1246, 2
        %v1248 = vmax.f32 %v1246, %v1247
        %v1249 = vrot.slane %v1248, 1
        %v1250 = vmax.f32 %v1248, %v1249
        %v1251 = vrot.slane %v1208, 4
        %v1252 = vmax.f32 %v1208, %v1251
        %v1253 = vrot.slane %v1252, 2
        %v1254 = vmax.f32 %v1252, %v1253
        %v1255 = vrot.slane %v1254, 1
        %v1256 = vmax.f32 %v1254, %v1255
        %v1257 = vld [vmem:[%s2] sm:$0x1]
        %v1259 = vlaneseq
        %v1260 = vshrl.u32 %v1259, 7
        %v1261 = vsub.s32 0, %v1260
        %v1262 = vrot.slane %v1257, %v1261
        %v1264 = vadd.f32 %v1214, %v1262
        %v1265 = vadd.f32 %v1220, %v1262
        %v1266 = vadd.f32 %v1226, %v1262
        %v1267 = vadd.f32 %v1232, %v1262
        %v1268 = vadd.f32 %v1238, %v1262
        %v1269 = vadd.f32 %v1244, %v1262
        %v1270 = vadd.f32 %v1250, %v1262
        %v1271 = vadd.f32 %v1256, %v1262
        %v1272 = vmax.f32 %v1264, 0.0
        %v1273 = vmax.f32 %v1265, 0.0
        %v1274 = vmax.f32 %v1266, 0.0
        %v1275 = vmax.f32 %v1267, 0.0
        %v1276 = vmax.f32 %v1268, 0.0
        %v1277 = vmax.f32 %v1269, 0.0
        %v1278 = vmax.f32 %v1270, 0.0
        %v1279 = vmax.f32 %v1271, 0.0
        %v1280 = vld [vmem:[#allocation7] sm:$0xff]
        %v1281 = vld [vmem:[#allocation7 + $0x8] sm:$0xff]
        %v1282 = vld [vmem:[#allocation7 + $0x10] sm:$0xff]
        %v1283 = vld [vmem:[#allocation7 + $0x18] sm:$0xff]
        %v1284 = vld [vmem:[#allocation7 + $0x20] sm:$0xff]
        %v1285 = vld [vmem:[#allocation7 + $0x28] sm:$0xff]
        %v1286 = vld [vmem:[#allocation7 + $0x30] sm:$0xff]
        %v1287 = vld [vmem:[#allocation7 + $0x38] sm:$0xff]
        %v1288 = vld [vmem:[#allocation7 + $0x40] sm:$0xff]
        %v1289 = vld [vmem:[#allocation7 + $0x48] sm:$0xff]
        %v1290 = vld [vmem:[#allocation7 + $0x50] sm:$0xff]
        %v1291 = vld [vmem:[#allocation7 + $0x58] sm:$0xff]
        %v1292 = vld [vmem:[#allocation7 + $0x60] sm:$0xff]
        %v1293 = vld [vmem:[#allocation7 + $0x68] sm:$0xff]
        %v1294 = vld [vmem:[#allocation7 + $0x70] sm:$0xff]
        %v1295 = vld [vmem:[#allocation7 + $0x78] sm:$0xff]
        %v1296 = vld [vmem:[#allocation7 + $0x80] sm:$0xff]
        %v1297 = vld [vmem:[#allocation7 + $0x88] sm:$0xff]
        %v1298 = vld [vmem:[#allocation7 + $0x90] sm:$0xff]
        %v1299 = vld [vmem:[#allocation7 + $0x98] sm:$0xff]
        %v1300 = vld [vmem:[#allocation7 + $0xa0] sm:$0xff]
        %v1301 = vld [vmem:[#allocation7 + $0xa8] sm:$0xff]
        %v1302 = vld [vmem:[#allocation7 + $0xb0] sm:$0xff]
        %v1303 = vld [vmem:[#allocation7 + $0xb8] sm:$0xff]
        %v1304 = vld [vmem:[#allocation7 + $0xc0] sm:$0xff]
        %v1305 = vld [vmem:[#allocation7 + $0xc8] sm:$0xff]
        %v1306 = vld [vmem:[#allocation7 + $0xd0] sm:$0xff]
        %v1307 = vld [vmem:[#allocation7 + $0xd8] sm:$0xff]
        %v1308 = vld [vmem:[#allocation7 + $0xe0] sm:$0xff]
        %v1309 = vld [vmem:[#allocation7 + $0xe8] sm:$0xff]
        %v1310 = vld [vmem:[#allocation7 + $0xf0] sm:$0xff]
        %v1311 = vld [vmem:[#allocation7 + $0xf8] sm:$0xff]
        %v1312 = vld [vmem:[%s4] sm:$0x3]
        %v1314 = vlaneseq
        %v1315 = vshrl.u32 %v1314, 7
        %v1316 = vsub.s32 0, %v1315
        %v1317 = vrot.slane %v1312, %v1316
        %v1318 = vlaneseq
        %v1319 = vshrl.u32 %v1318, 7
        %v1320 = vsub.s32 1, %v1319
        %v1321 = vrot.slane %v1312, %v1320
        %v1332 = vrot.slane %v1273, 7
        %vm1333 = vcmask 1041409
        %v1334 = vsel %vm1333, %v1332, %v1272
        %v1335 = vrot.slane %v1274, 6
        %vm1336 = vcmask 1042434
        %v1337 = vsel %vm1336, %v1335, %v1334
        %v1338 = vrot.slane %v1275, 5
        %vm1339 = vcmask 1043459
        %v1340 = vsel %vm1339, %v1338, %v1337
        %v1341 = vrot.slane %v1276, 4
        %vm1342 = vcmask 1044484
        %v1343 = vsel %vm1342, %v1341, %v1340
        %v1344 = vrot.slane %v1277, 3
        %vm1345 = vcmask 1045509
        %v1346 = vsel %vm1345, %v1344, %v1343
        %v1347 = vrot.slane %v1278, 2
        %vm1348 = vcmask 1046534
        %v1349 = vsel %vm1348, %v1347, %v1346
        %v1350 = vrot.slane %v1279, 1
        %vm1351 = vcmask 1047559
        %v1352 = vsel %vm1351, %v1350, %v1349
        %1354 = vmatprep.subr.mxu0 %v1281
        %1355 = vmatpush1.msra.mxu0 %v1280
        %1356 = vmatprep.subr.mxu0 %v1283
        %1357 = vmatpush1.msra.mxu0 %v1282
        %1358 = vmatprep.subr.mxu0 %v1285
        %1359 = vmatpush1.msra.mxu0 %v1284
        %1360 = vmatprep.subr.mxu0 %v1287
        %1361 = vmatpush1.msra.mxu0 %v1286
        %1362 = vmatprep.subr.mxu0 %v1289
        %1363 = vmatpush1.msra.mxu0 %v1288
        %1364 = vmatprep.subr.mxu0 %v1291
        %1365 = vmatpush1.msra.mxu0 %v1290
        %1366 = vmatprep.subr.mxu0 %v1293
        %1367 = vmatpush1.msra.mxu0 %v1292
        %1368 = vmatprep.subr.mxu0 %v1295
        %1369 = vmatpush1.msra.mxu0 %v1294
        %1370 = vmatprep.subr.mxu0 %v1297
        %1371 = vmatpush1.msra.mxu0 %v1296
        %1372 = vmatprep.subr.mxu0 %v1299
        %1373 = vmatpush1.msra.mxu0 %v1298
        %1374 = vmatprep.subr.mxu0 %v1301
        %1375 = vmatpush1.msra.mxu0 %v1300
        %1376 = vmatprep.subr.mxu0 %v1303
        %1377 = vmatpush1.msra.mxu0 %v1302
        %1378 = vmatprep.subr.mxu0 %v1305
        %1379 = vmatpush1.msra.mxu0 %v1304
        %1380 = vmatprep.subr.mxu0 %v1307
        %1381 = vmatpush1.msra.mxu0 %v1306
        %1382 = vmatprep.subr.mxu0 %v1309
        %1383 = vmatpush1.msra.mxu0 %v1308
        %1384 = vmatprep.subr.mxu0 %v1311
        %1385 = vmatpush1.msra.mxu0 %v1310
        %1386 = vmatprep.subr.mxu0 0.0
        %1387 = vmatpush1.msra.mxu0 0.0
        %1388 = vmatprep.subr.mxu0 0.0
        %1389 = vmatpush1.msra.mxu0 0.0
        %1390 = vmatprep.subr.mxu0 0.0
        %1391 = vmatpush1.msra.mxu0 0.0
        %1392 = vmatprep.subr.mxu0 0.0
        %1393 = vmatpush1.msra.mxu0 0.0
        %1394 = vmatprep.subr.mxu0 0.0
        %1395 = vmatpush1.msra.mxu0 0.0
        %1396 = vmatprep.subr.mxu0 0.0
        %1397 = vmatpush1.msra.mxu0 0.0
        %1398 = vmatprep.subr.mxu0 0.0
        %1399 = vmatpush1.msra.mxu0 0.0
        %1400 = vmatprep.subr.mxu0 0.0
        %1401 = vmatpush1.msra.mxu0 0.0
        %1402 = vmatprep.subr.mxu0 0.0
        %1403 = vmatpush1.msra.mxu0 0.0
        %1404 = vmatprep.subr.mxu0 0.0
        %1405 = vmatpush1.msra.mxu0 0.0
        %1406 = vmatprep.subr.mxu0 0.0
        %1407 = vmatpush1.msra.mxu0 0.0
        %1408 = vmatprep.subr.mxu0 0.0
        %1409 = vmatpush1.msra.mxu0 0.0
        %1410 = vmatprep.subr.mxu0 0.0
        %1411 = vmatpush1.msra.mxu0 0.0
        %1412 = vmatprep.subr.mxu0 0.0
        %1413 = vmatpush1.msra.mxu0 0.0
        %1414 = vmatprep.subr.mxu0 0.0
        %1415 = vmatpush1.msra.mxu0 0.0
        %1416 = vmatprep.subr.mxu0 0.0
        %1417 = vmatpush1.msra.mxu0 0.0
        %1418 = vmatprep.mubr.f32.mxu0 0.0
        %1419 = vmatmul.mubr.f32.gmra.mrb[0].mxu0 %v1352
        %v1420 = vpop.f32.mrb[0].mxu0
        %v1421 = vadd.f32 %v1317, %v1420
        %v1422 = vpop.f32.mrb[0].mxu0
        %v1423 = vadd.f32 %v1321, %v1422
        %1424 = vdwg.mxu0
        %v1425 = vmax.f32 %v1421, 0.0
        %v1426 = vxor.u32 %v1423, 2147483648
        %v1427 = vmul.f32 %v1426, 1.442695
        %v1428 = vpow.pop %v1427
        %v1429 = vadd.f32 %v1428, 1.0
        %v1430 = vrcp.pop %v1429
        %v1431 = vmul.f32 1.0, %v1430
        %v1432 = vmul.f32 %v1431, %v1425
        %v1433 = vsub.f32 1.0, %v1431
        %v1434 = vmul.f32 %v1433, %v1352
        %v1435 = vadd.f32 %v1432, %v1434
        %1436 = vst [vmem:[%s268] sm:$0xff] %v1435
        %s1437 = sand.u32 %s141, 1
        %s1438 = scalar_lea.sflag [#allocation4], %s1437
        %s1439 = sand.u32 %s141, 1
        %s1440 = smul.addr %s1439, 8
        %s1441 = scalar_lea.vmem [#allocation8], %s1440
        // Predicated region
        $region53: #{tpu_custom_call.1} parent=39 // pred_check
          %p1442 = pneg %p151
        $region54: #{tpu_custom_call.1} parent=39 // pred_check_branch
          %1444 = sbr.rel (%p1442) target = $region56
        $region55: #{tpu_custom_call.1} parent=39 // pred_region
          %s1446 = ssub.s32 128, 128
          %1447 = vsyncadd %s1438, %s1446
          %s1448 = smul.addr %s23, 128
          %s1449 = scalar_lea.hbm %s5, %s1448
          %s1451 = sshll.u32 %s1441, 4
          %s1452 = int_to_ptr.vmem [resolvable:$true] %s1451
          %1454 = dma.vmem_to_hbm [thread:$0]  %s1452, 128, %s1449, %s1438
        $region56: #{tpu_custom_call.1} parent=39 // pred_fallthru
          _
      $region40: #{tpu_custom_call.1} parent=5 // pred_fallthru
        _
      %p1455 = scmp.le.s32.totalorder 2, %s18
      // Predicated region
      $region57: #{tpu_custom_call.1} parent=5 // pred_check
        %p1456 = pneg %p1455
      $region58: #{tpu_custom_call.1} parent=5 // pred_check_branch
        %1458 = sbr.rel (%p1456) target = $region60
      $region59: #{tpu_custom_call.1} parent=5 // pred_region
        %s1459 = ssub.s32 %s18, 2
        // Predicated region
        $region61: #{tpu_custom_call.1} parent=59 // pred_check
          %p1460 = pneg %p157
        $region62: #{tpu_custom_call.1} parent=59 // pred_check_branch
          %1462 = sbr.rel (%p1460) target = $region64
        $region63: #{tpu_custom_call.1} parent=59 // pred_region
          %s1463 = sand.u32 %s142, 1
          %s1464 = scalar_lea.sflag [#allocation4], %s1463
          %s1465 = sand.u32 %s142, 1
          %s1466 = smul.addr %s1465, 8
          %s1467 = scalar_lea.vmem [#allocation8], %s1466
          %1468 = dma.done %s1464, 128
        $region64: #{tpu_custom_call.1} parent=59 // pred_fallthru
          _
      $region60: #{tpu_custom_call.1} parent=5 // pred_fallthru
        _
    $region6: #{tpu_custom_call.1} parent=1 // loop_footer
      %s22 = sadd.s32 1, %s18
    $region7: #{tpu_custom_call.1} parent=1 // loop_footer_branch
      %17 = sbr.rel target = $region3
    $region8: #{tpu_custom_call.1} parent=1 // loop_exit
      _
    %1469 = vsyncpa [#allocation3], 1
    %s1470 = scalar_lea.sflag [#allocation3], 1
    %1471 = vsyncpa %s1470, 1
    %1472 = vsyncpa [#allocation6], 1
    %1473 = vsyncpa [#allocation4], 1
    %s1474 = scalar_lea.sflag [#allocation4], 1
    %1475 = vsyncpa %s1474, 1

</llo_original>
